<compile_context>
chip_gen: v7x
topology: tpu7x:2x2x1
jax: 0.10.0
libtpu: 0.0.40
codegen_flags: <defaults>
</compile_context>

<pallas_src>
import jax
import jax.numpy as jnp
from jax.experimental import pallas as pl
from jax.experimental.pallas import tpu as pltpu


def centered_idft_matrix(n: int) -> jnp.ndarray:
    """M (n,n) complex64 s.t. M @ x == fftshift(ifft(ifftshift(x), norm='ortho'))."""
    eye = jnp.eye(n, dtype=jnp.complex64)
    m = jnp.fft.ifftshift(eye, axes=0)
    m = jnp.fft.ifft(m, axis=0, norm="ortho")
    m = jnp.fft.fftshift(m, axes=0)
    return m


def opat2_kernel(kr_ref, ki_ref, mask_ref, smap_ref, ah_ref, awt_ref, out_ref):
    grp = pl.program_id(1)

    G, _, H, Wt = smap_ref.shape          # coils in this group, H, output W tile
    f32 = jnp.float32

    # --- undersampling mask (per real/imag plane), tiled over the coil group ---
    mr = mask_ref[0]
    mi = mask_ref[1]
    mr_t = jnp.concatenate([mr] * G, axis=0) if G > 1 else mr   # (G*H, W)
    mi_t = jnp.concatenate([mi] * G, axis=0) if G > 1 else mi

    krm = kr_ref[...] * mr_t              # (G*H, W) bf16, masked k (real)
    kim = ki_ref[...] * mi_t              # (G*H, W) bf16, masked k (imag)

    # --- stage A: right multiply by A_W^T (IDFT along width), coil-batched ---
    # Gauss 3-multiply complex matmul; f32 accumulation on the MXU.
    awtr = awt_ref[0]
    awti = awt_ref[1]
    awts = awt_ref[2]                     # = awtr + awti (precomputed)
    p1 = jnp.dot(krm, awtr, preferred_element_type=f32)
    p2 = jnp.dot(kim, awti, preferred_element_type=f32)
    p3 = jnp.dot(krm + kim, awts, preferred_element_type=f32)
    tr = p1 - p2                          # (G*H, Wt) f32
    ti = p3 - p1 - p2

    # --- stage B: left multiply by A_H (IDFT along height) per coil, then ---
    # --- conj(Smap) complex multiply and coil sum, all in this program.   ---
    ahr = ah_ref[0]
    ahi = ah_ref[1]
    ahs = ah_ref[2]                       # = ahr + ahi (precomputed)
    cdt = ahr.dtype
    smap = smap_ref[...]                  # (G, 2, H, Wt) bf16

    acc_r = jnp.zeros((H, Wt), f32)
    acc_i = jnp.zeros((H, Wt), f32)
    for g in range(G):                    # static unroll; no grid-step overhead
        trg = tr[g * H:(g + 1) * H, :]
        tig = ti[g * H:(g + 1) * H, :]
        q1 = jnp.dot(ahr, trg.astype(cdt), preferred_element_type=f32)
        q2 = jnp.dot(ahi, tig.astype(cdt), preferred_element_type=f32)
        q3 = jnp.dot(ahs, (trg + tig).astype(cdt), preferred_element_type=f32)
        imr = q1 - q2
        imi = q3 - q1 - q2
        sr = smap[g, 0].astype(f32)
        si = smap[g, 1].astype(f32)
        acc_r = acc_r + imr * sr + imi * si     # im * conj(S), real part
        acc_i = acc_i + imi * sr - imr * si     # im * conj(S), imag part

    # First coil group writes, later groups accumulate (no RMW zero-init).
    @pl.when(grp == 0)
    def _():
        out_ref[0] = acc_r
        out_ref[1] = acc_i

    @pl.when(grp != 0)
    def _():
        out_ref[0] = out_ref[0] + acc_r
        out_ref[1] = out_ref[1] + acc_i


def opat2_forward(k, mask, smap, *, coils_per_group=8, num_w_tiles=1,
                  compute_dtype=jnp.bfloat16):
    """Pallas implementation of OPAT2.forward(k, mask) with self.Smap = smap."""
    num_coil, ch, H, W = smap.shape
    assert ch == 2 and k.shape == smap.shape
    assert mask.shape == (1, 2, H, W)
    assert H % 8 == 0, "H must be a multiple of 8 (sublane alignment)"
    assert W % num_w_tiles == 0
    Wt = W // num_w_tiles
    assert Wt == W or Wt % 128 == 0, "W tile must be lane-aligned or full"

    # Cap / round the coil group size to a divisor of num_coil (bounds VMEM).
    G = max(1, min(coils_per_group, num_coil))
    while num_coil % G:
        G -= 1
    num_groups = num_coil // G

    # Precomputed centered-IDFT matrices, split into [re, im, re+im] planes.
    a_h = centered_idft_matrix(H)
    a_wt = centered_idft_matrix(W).T      # right-multiply by A_W^T
    ah = jnp.stack([jnp.real(a_h), jnp.imag(a_h),
                    jnp.real(a_h) + jnp.imag(a_h)]).astype(compute_dtype)
    awt = jnp.stack([jnp.real(a_wt), jnp.imag(a_wt),
                     jnp.real(a_wt) + jnp.imag(a_wt)]).astype(compute_dtype)

    # Layout prep (fused with the bf16 cast by XLA, effectively free):
    # coils stacked along rows so stage A is one big (C*H, W) matmul per group.
    kr = k[:, 0].reshape(num_coil * H, W).astype(compute_dtype)
    ki = k[:, 1].reshape(num_coil * H, W).astype(compute_dtype)
    m2 = mask.reshape(2, H, W).astype(compute_dtype)
    sm = smap.astype(compute_dtype)

    grid_spec = pltpu.PrefetchScalarGridSpec(
        num_scalar_prefetch=0,
        grid=(num_w_tiles, num_groups),          # groups (accumulator) innermost
        in_specs=[
            pl.BlockSpec((G * H, W), lambda wt, g: (g, 0)),            # k real
            pl.BlockSpec((G * H, W), lambda wt, g: (g, 0)),            # k imag
            pl.BlockSpec((2, H, W), lambda wt, g: (0, 0, 0)),          # mask
            pl.BlockSpec((G, 2, H, Wt), lambda wt, g: (g, 0, 0, wt)),  # Smap
            pl.BlockSpec((3, H, H), lambda wt, g: (0, 0, 0)),          # A_H planes
            pl.BlockSpec((3, W, Wt), lambda wt, g: (0, 0, wt)),        # A_W^T planes
        ],
        out_specs=pl.BlockSpec((2, H, Wt), lambda wt, g: (0, 0, wt)),
    )

    return pl.pallas_call(
        opat2_kernel,
        out_shape=jax.ShapeDtypeStruct((2, H, W), jnp.float32),
        grid_spec=grid_spec,
        compiler_params=pltpu.CompilerParams(
            # W-tile axis is embarrassingly parallel (2 TCs on v7x);
            # coil-group axis carries the resident output accumulator.
            dimension_semantics=("parallel", "arbitrary"),
            vmem_limit_bytes=64 * 1024 * 1024,
        ),
    )(kr, ki, m2, sm, ah, awt)


def opat2_reference(k, mask, smap):
    """Pure-JAX reference mirroring the PyTorch semantics (uses jnp.fft)."""
    ku = k * mask                                     # broadcast over coil dim
    kc = ku[:, 0] + 1j * ku[:, 1]                     # (C, H, W) complex
    kc = jnp.fft.ifftshift(kc, axes=(-2, -1))
    imc = jnp.fft.ifftn(kc, axes=(-2, -1), norm="ortho")
    imc = jnp.fft.fftshift(imc, axes=(-2, -1))
    ir, ii = jnp.real(imc), jnp.imag(imc)
    sr, si = smap[:, 0], smap[:, 1]
    out_r = (ir * sr + ii * si).sum(0)
    out_i = (ii * sr - ir * si).sum(0)
    return jnp.stack([out_r, out_i], axis=0)


if __name__ == "__main__":
    def run_case(num_coil, H, W, coils_per_group, num_w_tiles, seed=0):
        key = jax.random.PRNGKey(seed)
        k1, k2, k3 = jax.random.split(key, 3)
        k = jax.random.normal(k1, (num_coil, 2, H, W), dtype=jnp.float32)
        smap = jax.random.normal(k2, (num_coil, 2, H, W), dtype=jnp.float32)
        m2d = (jax.random.uniform(k3, (H, W)) > 0.5).astype(jnp.float32)
        mask = jnp.broadcast_to(m2d, (1, 2, H, W)).astype(jnp.float32)

        out = opat2_forward(k, mask, smap, coils_per_group=coils_per_group,
                            num_w_tiles=num_w_tiles)
        out = jax.block_until_ready(out)
        ref = opat2_reference(k, mask, smap)
        assert out.shape == (2, H, W)
        err = float(jnp.max(jnp.abs(out - ref)))
        scale = float(jnp.max(jnp.abs(ref)))
        # bf16 inputs with f32 MXU accumulation: allow a few % of the dynamic range.
        assert err <= 5e-2 * scale + 1e-3, (err, scale)

    # Small case consistent with the module (single coil group, single W tile).
    run_case(num_coil=4, H=16, W=16, coils_per_group=8, num_w_tiles=1)
    # Exercise multi-group accumulation + parallel lane-dense (128-wide) W tiles.
    run_case(num_coil=4, H=16, W=256, coils_per_group=2, num_w_tiles=2)

    print("KERNEL_OK")
</pallas_src>

<mosaic_0001>
module attributes {stable_mosaic.version = 11 : i64} {
  func.func @opat2_kernel(%arg0: i32, %arg1: i32, %arg2: memref<64x16xbf16, #tpu.memory_space<vmem>>, %arg3: memref<64x16xbf16, #tpu.memory_space<vmem>>, %arg4: memref<2x16x16xbf16, #tpu.memory_space<vmem>>, %arg5: memref<4x2x16x16xbf16, #tpu.memory_space<vmem>>, %arg6: memref<3x16x16xbf16, #tpu.memory_space<vmem>>, %arg7: memref<3x16x16xbf16, #tpu.memory_space<vmem>>, %arg8: memref<2x16x16xf32, #tpu.memory_space<vmem>>) attributes {dimension_semantics = [#tpu.dimension_semantics<parallel>, #tpu.dimension_semantics<arbitrary>], iteration_bounds = array<i64: 1, 1>, scalar_prefetch = 0 : i64, scratch_operands = 0 : i64, tpu.core_type = #tpu.core_type<tc>, window_params = [{transform_indices = @transform_0, window_bounds = array<i64: 64, 16>}, {transform_indices = @transform_1, window_bounds = array<i64: 64, 16>}, {pipeline_mode = #tpu.pipeline_mode<synchronous>, transform_indices = @transform_2, window_bounds = array<i64: 2, 16, 16>}, {transform_indices = @transform_3, window_bounds = array<i64: 4, 2, 16, 16>}, {pipeline_mode = #tpu.pipeline_mode<synchronous>, transform_indices = @transform_4, window_bounds = array<i64: 3, 16, 16>}, {transform_indices = @transform_5, window_bounds = array<i64: 3, 16, 16>}, {transform_indices = @transform_6, window_bounds = array<i64: 2, 16, 16>}]} {
    %c0 = arith.constant 0 : index
    %c0_0 = arith.constant 0 : index
    %c0_1 = arith.constant 0 : index
    %0 = vector.load %arg4[%c0, %c0_0, %c0_1] : memref<2x16x16xbf16, #tpu.memory_space<vmem>>, vector<1x16x16xbf16>
    %1 = vector.shape_cast %0 : vector<1x16x16xbf16> to vector<16x16xbf16>
    %c1 = arith.constant 1 : index
    %c0_2 = arith.constant 0 : index
    %c0_3 = arith.constant 0 : index
    %2 = vector.load %arg4[%c1, %c0_2, %c0_3] : memref<2x16x16xbf16, #tpu.memory_space<vmem>>, vector<1x16x16xbf16>
    %3 = vector.shape_cast %2 : vector<1x16x16xbf16> to vector<16x16xbf16>
    %4 = tpu.concatenate %1, %1, %1, %1 in 0 : vector<16x16xbf16>, vector<16x16xbf16>, vector<16x16xbf16>, vector<16x16xbf16> -> vector<64x16xbf16>
    %5 = tpu.concatenate %3, %3, %3, %3 in 0 : vector<16x16xbf16>, vector<16x16xbf16>, vector<16x16xbf16>, vector<16x16xbf16> -> vector<64x16xbf16>
    %c0_4 = arith.constant 0 : index
    %c0_5 = arith.constant 0 : index
    %6 = vector.load %arg2[%c0_4, %c0_5] : memref<64x16xbf16, #tpu.memory_space<vmem>>, vector<64x16xbf16>
    %7 = arith.mulf %6, %4 : vector<64x16xbf16>
    %c0_6 = arith.constant 0 : index
    %c0_7 = arith.constant 0 : index
    %8 = vector.load %arg3[%c0_6, %c0_7] : memref<64x16xbf16, #tpu.memory_space<vmem>>, vector<64x16xbf16>
    %9 = arith.mulf %8, %5 : vector<64x16xbf16>
    %c0_8 = arith.constant 0 : index
    %c0_9 = arith.constant 0 : index
    %c0_10 = arith.constant 0 : index
    %10 = vector.load %arg7[%c0_8, %c0_9, %c0_10] : memref<3x16x16xbf16, #tpu.memory_space<vmem>>, vector<1x16x16xbf16>
    %11 = vector.shape_cast %10 : vector<1x16x16xbf16> to vector<16x16xbf16>
    %c1_11 = arith.constant 1 : index
    %c0_12 = arith.constant 0 : index
    %c0_13 = arith.constant 0 : index
    %12 = vector.load %arg7[%c1_11, %c0_12, %c0_13] : memref<3x16x16xbf16, #tpu.memory_space<vmem>>, vector<1x16x16xbf16>
    %13 = vector.shape_cast %12 : vector<1x16x16xbf16> to vector<16x16xbf16>
    %c2 = arith.constant 2 : index
    %c0_14 = arith.constant 0 : index
    %c0_15 = arith.constant 0 : index
    %14 = vector.load %arg7[%c2, %c0_14, %c0_15] : memref<3x16x16xbf16, #tpu.memory_space<vmem>>, vector<1x16x16xbf16>
    %15 = vector.shape_cast %14 : vector<1x16x16xbf16> to vector<16x16xbf16>
    %cst = arith.constant dense<0.000000e+00> : vector<64x16xf32>
    %16 = tpu.matmul %7, %11, %cst {dimension_numbers = #tpu.dot_dimension_numbers<[1], [0], [0], [1], [0, 0, 1, 1], [], []>} : vector<64x16xbf16>, vector<16x16xbf16>, vector<64x16xf32> -> vector<64x16xf32>
    %cst_16 = arith.constant dense<0.000000e+00> : vector<64x16xf32>
    %17 = tpu.matmul %9, %13, %cst_16 {dimension_numbers = #tpu.dot_dimension_numbers<[1], [0], [0], [1], [0, 0, 1, 1], [], []>} : vector<64x16xbf16>, vector<16x16xbf16>, vector<64x16xf32> -> vector<64x16xf32>
    %18 = arith.addf %7, %9 : vector<64x16xbf16>
    %cst_17 = arith.constant dense<0.000000e+00> : vector<64x16xf32>
    %19 = tpu.matmul %18, %15, %cst_17 {dimension_numbers = #tpu.dot_dimension_numbers<[1], [0], [0], [1], [0, 0, 1, 1], [], []>} : vector<64x16xbf16>, vector<16x16xbf16>, vector<64x16xf32> -> vector<64x16xf32>
    %20 = arith.subf %16, %17 : vector<64x16xf32>
    %21 = arith.subf %19, %16 : vector<64x16xf32>
    %22 = arith.subf %21, %17 : vector<64x16xf32>
    %c0_18 = arith.constant 0 : index
    %c0_19 = arith.constant 0 : index
    %c0_20 = arith.constant 0 : index
    %23 = vector.load %arg6[%c0_18, %c0_19, %c0_20] : memref<3x16x16xbf16, #tpu.memory_space<vmem>>, vector<1x16x16xbf16>
    %24 = vector.shape_cast %23 : vector<1x16x16xbf16> to vector<16x16xbf16>
    %c1_21 = arith.constant 1 : index
    %c0_22 = arith.constant 0 : index
    %c0_23 = arith.constant 0 : index
    %25 = vector.load %arg6[%c1_21, %c0_22, %c0_23] : memref<3x16x16xbf16, #tpu.memory_space<vmem>>, vector<1x16x16xbf16>
    %26 = vector.shape_cast %25 : vector<1x16x16xbf16> to vector<16x16xbf16>
    %c2_24 = arith.constant 2 : index
    %c0_25 = arith.constant 0 : index
    %c0_26 = arith.constant 0 : index
    %27 = vector.load %arg6[%c2_24, %c0_25, %c0_26] : memref<3x16x16xbf16, #tpu.memory_space<vmem>>, vector<1x16x16xbf16>
    %28 = vector.shape_cast %27 : vector<1x16x16xbf16> to vector<16x16xbf16>
    %c0_27 = arith.constant 0 : index
    %c0_28 = arith.constant 0 : index
    %c0_29 = arith.constant 0 : index
    %c0_30 = arith.constant 0 : index
    %29 = vector.load %arg5[%c0_27, %c0_28, %c0_29, %c0_30] : memref<4x2x16x16xbf16, #tpu.memory_space<vmem>>, vector<4x2x16x16xbf16>
    %cst_31 = arith.constant 0.000000e+00 : f32
    %30 = vector.broadcast %cst_31 : f32 to vector<16x16xf32>
    %cst_32 = arith.constant 0.000000e+00 : f32
    %31 = vector.broadcast %cst_32 : f32 to vector<16x16xf32>
    %32 = vector.extract_strided_slice %20 {offsets = [0, 0], sizes = [16, 16], strides = [1, 1]} : vector<64x16xf32> to vector<16x16xf32>
    %33 = vector.extract_strided_slice %22 {offsets = [0, 0], sizes = [16, 16], strides = [1, 1]} : vector<64x16xf32> to vector<16x16xf32>
    %34 = arith.truncf %32 : vector<16x16xf32> to vector<16x16xbf16>
    %cst_33 = arith.constant dense<0.000000e+00> : vector<16x16xf32>
    %35 = tpu.matmul %24, %34, %cst_33 {dimension_numbers = #tpu.dot_dimension_numbers<[1], [0], [0], [1], [0, 0, 1, 1], [], []>} : vector<16x16xbf16>, vector<16x16xbf16>, vector<16x16xf32> -> vector<16x16xf32>
    %36 = arith.truncf %33 : vector<16x16xf32> to vector<16x16xbf16>
    %cst_34 = arith.constant dense<0.000000e+00> : vector<16x16xf32>
    %37 = tpu.matmul %26, %36, %cst_34 {dimension_numbers = #tpu.dot_dimension_numbers<[1], [0], [0], [1], [0, 0, 1, 1], [], []>} : vector<16x16xbf16>, vector<16x16xbf16>, vector<16x16xf32> -> vector<16x16xf32>
    %38 = arith.addf %32, %33 : vector<16x16xf32>
    %39 = arith.truncf %38 : vector<16x16xf32> to vector<16x16xbf16>
    %cst_35 = arith.constant dense<0.000000e+00> : vector<16x16xf32>
    %40 = tpu.matmul %28, %39, %cst_35 {dimension_numbers = #tpu.dot_dimension_numbers<[1], [0], [0], [1], [0, 0, 1, 1], [], []>} : vector<16x16xbf16>, vector<16x16xbf16>, vector<16x16xf32> -> vector<16x16xf32>
    %41 = arith.subf %35, %37 : vector<16x16xf32>
    %42 = arith.subf %40, %35 : vector<16x16xf32>
    %43 = arith.subf %42, %37 : vector<16x16xf32>
    %44 = vector.extract_strided_slice %29 {offsets = [0, 0, 0, 0], sizes = [1, 1, 16, 16], strides = [1, 1, 1, 1]} : vector<4x2x16x16xbf16> to vector<1x1x16x16xbf16>
    %45 = vector.shape_cast %44 : vector<1x1x16x16xbf16> to vector<16x16xbf16>
    %46 = arith.extf %45 : vector<16x16xbf16> to vector<16x16xf32>
    %47 = vector.extract_strided_slice %29 {offsets = [0, 1, 0, 0], sizes = [1, 1, 16, 16], strides = [1, 1, 1, 1]} : vector<4x2x16x16xbf16> to vector<1x1x16x16xbf16>
    %48 = vector.shape_cast %47 : vector<1x1x16x16xbf16> to vector<16x16xbf16>
    %49 = arith.extf %48 : vector<16x16xbf16> to vector<16x16xf32>
    %50 = arith.mulf %41, %46 : vector<16x16xf32>
    %51 = arith.addf %30, %50 : vector<16x16xf32>
    %52 = arith.mulf %43, %49 : vector<16x16xf32>
    %53 = arith.addf %51, %52 : vector<16x16xf32>
    %54 = arith.mulf %43, %46 : vector<16x16xf32>
    %55 = arith.addf %31, %54 : vector<16x16xf32>
    %56 = arith.mulf %41, %49 : vector<16x16xf32>
    %57 = arith.subf %55, %56 : vector<16x16xf32>
    %58 = vector.extract_strided_slice %20 {offsets = [16, 0], sizes = [16, 16], strides = [1, 1]} : vector<64x16xf32> to vector<16x16xf32>
    %59 = vector.extract_strided_slice %22 {offsets = [16, 0], sizes = [16, 16], strides = [1, 1]} : vector<64x16xf32> to vector<16x16xf32>
    %60 = arith.truncf %58 : vector<16x16xf32> to vector<16x16xbf16>
    %cst_36 = arith.constant dense<0.000000e+00> : vector<16x16xf32>
    %61 = tpu.matmul %24, %60, %cst_36 {dimension_numbers = #tpu.dot_dimension_numbers<[1], [0], [0], [1], [0, 0, 1, 1], [], []>} : vector<16x16xbf16>, vector<16x16xbf16>, vector<16x16xf32> -> vector<16x16xf32>
    %62 = arith.truncf %59 : vector<16x16xf32> to vector<16x16xbf16>
    %cst_37 = arith.constant dense<0.000000e+00> : vector<16x16xf32>
    %63 = tpu.matmul %26, %62, %cst_37 {dimension_numbers = #tpu.dot_dimension_numbers<[1], [0], [0], [1], [0, 0, 1, 1], [], []>} : vector<16x16xbf16>, vector<16x16xbf16>, vector<16x16xf32> -> vector<16x16xf32>
    %64 = arith.addf %58, %59 : vector<16x16xf32>
    %65 = arith.truncf %64 : vector<16x16xf32> to vector<16x16xbf16>
    %cst_38 = arith.constant dense<0.000000e+00> : vector<16x16xf32>
    %66 = tpu.matmul %28, %65, %cst_38 {dimension_numbers = #tpu.dot_dimension_numbers<[1], [0], [0], [1], [0, 0, 1, 1], [], []>} : vector<16x16xbf16>, vector<16x16xbf16>, vector<16x16xf32> -> vector<16x16xf32>
    %67 = arith.subf %61, %63 : vector<16x16xf32>
    %68 = arith.subf %66, %61 : vector<16x16xf32>
    %69 = arith.subf %68, %63 : vector<16x16xf32>
    %70 = vector.extract_strided_slice %29 {offsets = [1, 0, 0, 0], sizes = [1, 1, 16, 16], strides = [1, 1, 1, 1]} : vector<4x2x16x16xbf16> to vector<1x1x16x16xbf16>
    %71 = vector.shape_cast %70 : vector<1x1x16x16xbf16> to vector<16x16xbf16>
    %72 = arith.extf %71 : vector<16x16xbf16> to vector<16x16xf32>
    %73 = vector.extract_strided_slice %29 {offsets = [1, 1, 0, 0], sizes = [1, 1, 16, 16], strides = [1, 1, 1, 1]} : vector<4x2x16x16xbf16> to vector<1x1x16x16xbf16>
    %74 = vector.shape_cast %73 : vector<1x1x16x16xbf16> to vector<16x16xbf16>
    %75 = arith.extf %74 : vector<16x16xbf16> to vector<16x16xf32>
    %76 = arith.mulf %67, %72 : vector<16x16xf32>
    %77 = arith.addf %53, %76 : vector<16x16xf32>
    %78 = arith.mulf %69, %75 : vector<16x16xf32>
    %79 = arith.addf %77, %78 : vector<16x16xf32>
    %80 = arith.mulf %69, %72 : vector<16x16xf32>
    %81 = arith.addf %57, %80 : vector<16x16xf32>
    %82 = arith.mulf %67, %75 : vector<16x16xf32>
    %83 = arith.subf %81, %82 : vector<16x16xf32>
    %84 = vector.extract_strided_slice %20 {offsets = [32, 0], sizes = [16, 16], strides = [1, 1]} : vector<64x16xf32> to vector<16x16xf32>
    %85 = vector.extract_strided_slice %22 {offsets = [32, 0], sizes = [16, 16], strides = [1, 1]} : vector<64x16xf32> to vector<16x16xf32>
    %86 = arith.truncf %84 : vector<16x16xf32> to vector<16x16xbf16>
    %cst_39 = arith.constant dense<0.000000e+00> : vector<16x16xf32>
    %87 = tpu.matmul %24, %86, %cst_39 {dimension_numbers = #tpu.dot_dimension_numbers<[1], [0], [0], [1], [0, 0, 1, 1], [], []>} : vector<16x16xbf16>, vector<16x16xbf16>, vector<16x16xf32> -> vector<16x16xf32>
    %88 = arith.truncf %85 : vector<16x16xf32> to vector<16x16xbf16>
    %cst_40 = arith.constant dense<0.000000e+00> : vector<16x16xf32>
    %89 = tpu.matmul %26, %88, %cst_40 {dimension_numbers = #tpu.dot_dimension_numbers<[1], [0], [0], [1], [0, 0, 1, 1], [], []>} : vector<16x16xbf16>, vector<16x16xbf16>, vector<16x16xf32> -> vector<16x16xf32>
    %90 = arith.addf %84, %85 : vector<16x16xf32>
    %91 = arith.truncf %90 : vector<16x16xf32> to vector<16x16xbf16>
    %cst_41 = arith.constant dense<0.000000e+00> : vector<16x16xf32>
    %92 = tpu.matmul %28, %91, %cst_41 {dimension_numbers = #tpu.dot_dimension_numbers<[1], [0], [0], [1], [0, 0, 1, 1], [], []>} : vector<16x16xbf16>, vector<16x16xbf16>, vector<16x16xf32> -> vector<16x16xf32>
    %93 = arith.subf %87, %89 : vector<16x16xf32>
    %94 = arith.subf %92, %87 : vector<16x16xf32>
    %95 = arith.subf %94, %89 : vector<16x16xf32>
    %96 = vector.extract_strided_slice %29 {offsets = [2, 0, 0, 0], sizes = [1, 1, 16, 16], strides = [1, 1, 1, 1]} : vector<4x2x16x16xbf16> to vector<1x1x16x16xbf16>
    %97 = vector.shape_cast %96 : vector<1x1x16x16xbf16> to vector<16x16xbf16>
    %98 = arith.extf %97 : vector<16x16xbf16> to vector<16x16xf32>
    %99 = vector.extract_strided_slice %29 {offsets = [2, 1, 0, 0], sizes = [1, 1, 16, 16], strides = [1, 1, 1, 1]} : vector<4x2x16x16xbf16> to vector<1x1x16x16xbf16>
    %100 = vector.shape_cast %99 : vector<1x1x16x16xbf16> to vector<16x16xbf16>
    %101 = arith.extf %100 : vector<16x16xbf16> to vector<16x16xf32>
    %102 = arith.mulf %93, %98 : vector<16x16xf32>
    %103 = arith.addf %79, %102 : vector<16x16xf32>
    %104 = arith.mulf %95, %101 : vector<16x16xf32>
    %105 = arith.addf %103, %104 : vector<16x16xf32>
    %106 = arith.mulf %95, %98 : vector<16x16xf32>
    %107 = arith.addf %83, %106 : vector<16x16xf32>
    %108 = arith.mulf %93, %101 : vector<16x16xf32>
    %109 = arith.subf %107, %108 : vector<16x16xf32>
    %110 = vector.extract_strided_slice %20 {offsets = [48, 0], sizes = [16, 16], strides = [1, 1]} : vector<64x16xf32> to vector<16x16xf32>
    %111 = vector.extract_strided_slice %22 {offsets = [48, 0], sizes = [16, 16], strides = [1, 1]} : vector<64x16xf32> to vector<16x16xf32>
    %112 = arith.truncf %110 : vector<16x16xf32> to vector<16x16xbf16>
    %cst_42 = arith.constant dense<0.000000e+00> : vector<16x16xf32>
    %113 = tpu.matmul %24, %112, %cst_42 {dimension_numbers = #tpu.dot_dimension_numbers<[1], [0], [0], [1], [0, 0, 1, 1], [], []>} : vector<16x16xbf16>, vector<16x16xbf16>, vector<16x16xf32> -> vector<16x16xf32>
    %114 = arith.truncf %111 : vector<16x16xf32> to vector<16x16xbf16>
    %cst_43 = arith.constant dense<0.000000e+00> : vector<16x16xf32>
    %115 = tpu.matmul %26, %114, %cst_43 {dimension_numbers = #tpu.dot_dimension_numbers<[1], [0], [0], [1], [0, 0, 1, 1], [], []>} : vector<16x16xbf16>, vector<16x16xbf16>, vector<16x16xf32> -> vector<16x16xf32>
    %116 = arith.addf %110, %111 : vector<16x16xf32>
    %117 = arith.truncf %116 : vector<16x16xf32> to vector<16x16xbf16>
    %cst_44 = arith.constant dense<0.000000e+00> : vector<16x16xf32>
    %118 = tpu.matmul %28, %117, %cst_44 {dimension_numbers = #tpu.dot_dimension_numbers<[1], [0], [0], [1], [0, 0, 1, 1], [], []>} : vector<16x16xbf16>, vector<16x16xbf16>, vector<16x16xf32> -> vector<16x16xf32>
    %119 = arith.subf %113, %115 : vector<16x16xf32>
    %120 = arith.subf %118, %113 : vector<16x16xf32>
    %121 = arith.subf %120, %115 : vector<16x16xf32>
    %122 = vector.extract_strided_slice %29 {offsets = [3, 0, 0, 0], sizes = [1, 1, 16, 16], strides = [1, 1, 1, 1]} : vector<4x2x16x16xbf16> to vector<1x1x16x16xbf16>
    %123 = vector.shape_cast %122 : vector<1x1x16x16xbf16> to vector<16x16xbf16>
    %124 = arith.extf %123 : vector<16x16xbf16> to vector<16x16xf32>
    %125 = vector.extract_strided_slice %29 {offsets = [3, 1, 0, 0], sizes = [1, 1, 16, 16], strides = [1, 1, 1, 1]} : vector<4x2x16x16xbf16> to vector<1x1x16x16xbf16>
    %126 = vector.shape_cast %125 : vector<1x1x16x16xbf16> to vector<16x16xbf16>
    %127 = arith.extf %126 : vector<16x16xbf16> to vector<16x16xf32>
    %128 = arith.mulf %119, %124 : vector<16x16xf32>
    %129 = arith.addf %105, %128 : vector<16x16xf32>
    %130 = arith.mulf %121, %127 : vector<16x16xf32>
    %131 = arith.addf %129, %130 : vector<16x16xf32>
    %132 = arith.mulf %121, %124 : vector<16x16xf32>
    %133 = arith.addf %109, %132 : vector<16x16xf32>
    %134 = arith.mulf %119, %127 : vector<16x16xf32>
    %135 = arith.subf %133, %134 : vector<16x16xf32>
    %c0_i32 = arith.constant 0 : i32
    %136 = arith.cmpi eq, %arg1, %c0_i32 : i32
    %137 = arith.extui %136 : i1 to i32
    %c0_i32_45 = arith.constant 0 : i32
    %138 = arith.cmpi ne, %137, %c0_i32_45 : i32
    scf.if %138 {
      %c0_48 = arith.constant 0 : index
      %c0_49 = arith.constant 0 : index
      %c0_50 = arith.constant 0 : index
      %142 = vector.load %arg8[%c0_48, %c0_49, %c0_50] : memref<2x16x16xf32, #tpu.memory_space<vmem>>, vector<1x16x16xf32>
      %143 = vector.shape_cast %142 : vector<1x16x16xf32> to vector<16x16xf32>
      %144 = vector.shape_cast %131 : vector<16x16xf32> to vector<1x16x16xf32>
      tpu.vector_store %arg8[%c0_48, %c0_49, %c0_50], %144 {strides = array<i32>} : memref<2x16x16xf32, #tpu.memory_space<vmem>>, vector<1x16x16xf32>,
      %c1_51 = arith.constant 1 : index
      %c0_52 = arith.constant 0 : index
      %c0_53 = arith.constant 0 : index
      %145 = vector.load %arg8[%c1_51, %c0_52, %c0_53] : memref<2x16x16xf32, #tpu.memory_space<vmem>>, vector<1x16x16xf32>
      %146 = vector.shape_cast %145 : vector<1x16x16xf32> to vector<16x16xf32>
      %147 = vector.shape_cast %135 : vector<16x16xf32> to vector<1x16x16xf32>
      tpu.vector_store %arg8[%c1_51, %c0_52, %c0_53], %147 {strides = array<i32>} : memref<2x16x16xf32, #tpu.memory_space<vmem>>, vector<1x16x16xf32>,
    } else {
    }
    %c0_i32_46 = arith.constant 0 : i32
    %139 = arith.cmpi ne, %arg1, %c0_i32_46 : i32
    %140 = arith.extui %139 : i1 to i32
    %c0_i32_47 = arith.constant 0 : i32
    %141 = arith.cmpi ne, %140, %c0_i32_47 : i32
    scf.if %141 {
      %c0_48 = arith.constant 0 : index
      %c0_49 = arith.constant 0 : index
      %c0_50 = arith.constant 0 : index
      %142 = vector.load %arg8[%c0_48, %c0_49, %c0_50] : memref<2x16x16xf32, #tpu.memory_space<vmem>>, vector<1x16x16xf32>
      %143 = vector.shape_cast %142 : vector<1x16x16xf32> to vector<16x16xf32>
      %144 = arith.addf %143, %131 : vector<16x16xf32>
      %c0_51 = arith.constant 0 : index
      %c0_52 = arith.constant 0 : index
      %c0_53 = arith.constant 0 : index
      %145 = vector.load %arg8[%c0_51, %c0_52, %c0_53] : memref<2x16x16xf32, #tpu.memory_space<vmem>>, vector<1x16x16xf32>
      %146 = vector.shape_cast %145 : vector<1x16x16xf32> to vector<16x16xf32>
      %147 = vector.shape_cast %144 : vector<16x16xf32> to vector<1x16x16xf32>
      tpu.vector_store %arg8[%c0_51, %c0_52, %c0_53], %147 {strides = array<i32>} : memref<2x16x16xf32, #tpu.memory_space<vmem>>, vector<1x16x16xf32>,
      %c1_54 = arith.constant 1 : index
      %c0_55 = arith.constant 0 : index
      %c0_56 = arith.constant 0 : index
      %148 = vector.load %arg8[%c1_54, %c0_55, %c0_56] : memref<2x16x16xf32, #tpu.memory_space<vmem>>, vector<1x16x16xf32>
      %149 = vector.shape_cast %148 : vector<1x16x16xf32> to vector<16x16xf32>
      %150 = arith.addf %149, %135 : vector<16x16xf32>
      %c1_57 = arith.constant 1 : index
      %c0_58 = arith.constant 0 : index
      %c0_59 = arith.constant 0 : index
      %151 = vector.load %arg8[%c1_57, %c0_58, %c0_59] : memref<2x16x16xf32, #tpu.memory_space<vmem>>, vector<1x16x16xf32>
      %152 = vector.shape_cast %151 : vector<1x16x16xf32> to vector<16x16xf32>
      %153 = vector.shape_cast %150 : vector<16x16xf32> to vector<1x16x16xf32>
      tpu.vector_store %arg8[%c1_57, %c0_58, %c0_59], %153 {strides = array<i32>} : memref<2x16x16xf32, #tpu.memory_space<vmem>>, vector<1x16x16xf32>,
    } else {
    }
    return
  }
  func.func @transform_0(%arg0: i32, %arg1: i32) -> (i32, i32) {
    %c0_i32 = arith.constant 0 : i32
    %c0_i32_0 = arith.constant 0 : i32
    return %arg1, %c0_i32 : i32, i32
  }
  func.func @transform_1(%arg0: i32, %arg1: i32) -> (i32, i32) {
    %c0_i32 = arith.constant 0 : i32
    %c0_i32_0 = arith.constant 0 : i32
    return %arg1, %c0_i32 : i32, i32
  }
  func.func @transform_2(%arg0: i32, %arg1: i32) -> (i32, i32, i32) {
    %c0_i32 = arith.constant 0 : i32
    %c0_i32_0 = arith.constant 0 : i32
    %c0_i32_1 = arith.constant 0 : i32
    %c0_i32_2 = arith.constant 0 : i32
    return %c0_i32, %c0_i32_0, %c0_i32_1 : i32, i32, i32
  }
  func.func @transform_3(%arg0: i32, %arg1: i32) -> (i32, i32, i32, i32) {
    %c0_i32 = arith.constant 0 : i32
    %c0_i32_0 = arith.constant 0 : i32
    %c0_i32_1 = arith.constant 0 : i32
    return %arg1, %c0_i32, %c0_i32_0, %arg0 : i32, i32, i32, i32
  }
  func.func @transform_4(%arg0: i32, %arg1: i32) -> (i32, i32, i32) {
    %c0_i32 = arith.constant 0 : i32
    %c0_i32_0 = arith.constant 0 : i32
    %c0_i32_1 = arith.constant 0 : i32
    %c0_i32_2 = arith.constant 0 : i32
    return %c0_i32, %c0_i32_0, %c0_i32_1 : i32, i32, i32
  }
  func.func @transform_5(%arg0: i32, %arg1: i32) -> (i32, i32, i32) {
    %c0_i32 = arith.constant 0 : i32
    %c0_i32_0 = arith.constant 0 : i32
    %c0_i32_1 = arith.constant 0 : i32
    return %c0_i32, %c0_i32_0, %arg0 : i32, i32, i32
  }
  func.func @transform_6(%arg0: i32, %arg1: i32) -> (i32, i32, i32) {
    %c0_i32 = arith.constant 0 : i32
    %c0_i32_0 = arith.constant 0 : i32
    %c0_i32_1 = arith.constant 0 : i32
    return %c0_i32, %c0_i32_0, %arg0 : i32, i32, i32
  }
}

</mosaic_0001>

<llo_original>
// kernel: tpu_custom_call.1
$region0: #{tpu_custom_call.1}
  #allocation0 [shape = 'u32[]', space=smem, size = 0x4, offset = 0x4, fixed_abs, tag = 'smem constant byte address 0x4 - core index']
  #allocation1 [shape = 'u32[144,128]{1,0:T(1,128)}', space=vmem, size = 0x12000, scoped, tag = 'internal scratch']
  %s0 = inlined_call_operand.hbm [shape: bf16[64,16], index: 0, kind: input, shape index: {}]
  %s1 = inlined_call_operand.hbm [shape: bf16[64,16], index: 1, kind: input, shape index: {}]
  %s2 = inlined_call_operand.hbm [shape: bf16[2,16,16], index: 2, kind: input, shape index: {}]
  %s3 = inlined_call_operand.hbm [shape: bf16[4,2,16,16], index: 3, kind: input, shape index: {}]
  %s4 = inlined_call_operand.hbm [shape: bf16[3,16,16], index: 4, kind: input, shape index: {}]
  %s5 = inlined_call_operand.hbm [shape: bf16[3,16,16], index: 5, kind: input, shape index: {}]
  %s6 = inlined_call_operand.hbm [shape: f32[2,16,16], index: 6, kind: output, shape index: {}]
  %s7 = sld [smem:[#allocation0]]
  $region66: #{tpu_custom_call.1} parent=0
    _
  %s9 = ssub.s32 1, %s7
  %s10 = scalar_select 0, %s9, %s7
  $region1: #{tpu_custom_call.1} parent=0
    #allocation2 [shape = 'u8[16384]{0}', space=vmem, size = 0x4000, scoped, tag = 'input window, operand 0, single buffered']
    #allocation3 [shape = 's32[1]{0}', space=sflag, size = 0x4, scoped, tag = 'scoped memory for tpu_custom_call.1']
    #allocation4 [shape = 's32[1]{0}', space=sflag, size = 0x4, scoped, tag = 'scoped memory for tpu_custom_call.1']
    #allocation5 [shape = 'u8[16384]{0}', space=vmem, size = 0x4000, scoped, tag = 'input window, operand 1, single buffered']
    #allocation6 [shape = 's32[1]{0}', space=sflag, size = 0x4, scoped, tag = 'scoped memory for tpu_custom_call.1']
    #allocation7 [shape = 'u8[8192]{0}', space=vmem, size = 0x2000, scoped, tag = 'input window, operand 2, single buffered']
    #allocation8 [shape = 'u8[32768]{0}', space=vmem, size = 0x8000, scoped, tag = 'input window, operand 3, single buffered']
    #allocation9 [shape = 's32[1]{0}', space=sflag, size = 0x4, scoped, tag = 'scoped memory for tpu_custom_call.1']
    #allocation10 [shape = 'u8[12288]{0}', space=vmem, size = 0x3000, scoped, tag = 'input window, operand 4, single buffered']
    #allocation11 [shape = 'u8[12288]{0}', space=vmem, size = 0x3000, scoped, tag = 'input window, operand 5, single buffered']
    #allocation12 [shape = 's32[1]{0}', space=sflag, size = 0x4, scoped, tag = 'scoped memory for tpu_custom_call.1']
    #allocation13 [shape = 'u8[16384]{0}', space=vmem, size = 0x4000, scoped, tag = 'output window, operand 0, single buffered']
    %11 = vsyncpa [#allocation3], 0
    %12 = vsyncpa [#allocation6], 0
    %13 = vsyncpa [#allocation9], 0
    %14 = vsyncpa [#allocation12], 0
    %15 = vsyncpa [#allocation4], 0
    // Predicated region
    $region2: #{tpu_custom_call.1} parent=1 // pred_check
      _
    $region3: #{tpu_custom_call.1} parent=1 // pred_check_branch
      %17 = sbr.rel (0) target = $region5
    $region4: #{tpu_custom_call.1} parent=1 // pred_region
      %s19 = ssub.s32 512, 512
      %20 = vsyncadd [#allocation3], %s19
      %s21 = sshll.u32 [#allocation2], 4
      %s22 = int_to_ptr.vmem [resolvable:$true] %s21
      %27 = dma.hbm_to_vmem [thread:$0]  %s0, 512, %s22, [#allocation3], 64, 64, 4
    $region5: #{tpu_custom_call.1} parent=1 // pred_fallthru
      _
    // Predicated region
    $region6: #{tpu_custom_call.1} parent=1 // pred_check
      _
    $region7: #{tpu_custom_call.1} parent=1 // pred_check_branch
      %29 = sbr.rel (0) target = $region9
    $region8: #{tpu_custom_call.1} parent=1 // pred_region
      %s31 = ssub.s32 512, 512
      %32 = vsyncadd [#allocation6], %s31
      %s33 = sshll.u32 [#allocation5], 4
      %s34 = int_to_ptr.vmem [resolvable:$true] %s33
      %39 = dma.hbm_to_vmem [thread:$0]  %s1, 512, %s34, [#allocation6], 64, 64, 4
    $region9: #{tpu_custom_call.1} parent=1 // pred_fallthru
      _
    // Predicated region
    $region10: #{tpu_custom_call.1} parent=1 // pred_check
      _
    $region11: #{tpu_custom_call.1} parent=1 // pred_check_branch
      %41 = sbr.rel (0) target = $region13
    $region12: #{tpu_custom_call.1} parent=1 // pred_region
      %s43 = ssub.s32 256, 256
      %44 = vsyncadd [#allocation6], %s43
      %s45 = sshll.u32 [#allocation7], 4
      %s46 = int_to_ptr.vmem [resolvable:$true] %s45
      %51 = dma.hbm_to_vmem [thread:$0]  %s2, 256, %s46, [#allocation6], 64, 64, 4
    $region13: #{tpu_custom_call.1} parent=1 // pred_fallthru
      _
    // Predicated region
    $region14: #{tpu_custom_call.1} parent=1 // pred_check
      _
    $region15: #{tpu_custom_call.1} parent=1 // pred_check_branch
      %53 = sbr.rel (0) target = $region17
    $region16: #{tpu_custom_call.1} parent=1 // pred_region
      %s55 = ssub.s32 1024, 1024
      %56 = vsyncadd [#allocation9], %s55
      %s57 = sshll.u32 [#allocation8], 4
      %s58 = int_to_ptr.vmem [resolvable:$true] %s57
      %63 = dma.hbm_to_vmem [thread:$0]  %s3, 1024, %s58, [#allocation9], 64, 64, 4
    $region17: #{tpu_custom_call.1} parent=1 // pred_fallthru
      _
    // Predicated region
    $region18: #{tpu_custom_call.1} parent=1 // pred_check
      _
    $region19: #{tpu_custom_call.1} parent=1 // pred_check_branch
      %65 = sbr.rel (0) target = $region21
    $region20: #{tpu_custom_call.1} parent=1 // pred_region
      %s67 = ssub.s32 384, 384
      %68 = vsyncadd [#allocation9], %s67
      %s69 = sshll.u32 [#allocation10], 4
      %s70 = int_to_ptr.vmem [resolvable:$true] %s69
      %75 = dma.hbm_to_vmem [thread:$0]  %s4, 384, %s70, [#allocation9], 64, 64, 4
    $region21: #{tpu_custom_call.1} parent=1 // pred_fallthru
      _
    // Predicated region
    $region22: #{tpu_custom_call.1} parent=1 // pred_check
      _
    $region23: #{tpu_custom_call.1} parent=1 // pred_check_branch
      %77 = sbr.rel (0) target = $region25
    $region24: #{tpu_custom_call.1} parent=1 // pred_region
      %s79 = ssub.s32 384, 384
      %80 = vsyncadd [#allocation12], %s79
      %s81 = sshll.u32 [#allocation11], 4
      %s82 = int_to_ptr.vmem [resolvable:$true] %s81
      %87 = dma.hbm_to_vmem [thread:$0]  %s5, 384, %s82, [#allocation12], 64, 64, 4
    $region25: #{tpu_custom_call.1} parent=1 // pred_fallthru
      _
    // Predicated region
    $region26: #{tpu_custom_call.1} parent=1 // pred_check
      _
    $region27: #{tpu_custom_call.1} parent=1 // pred_check_branch
      %89 = sbr.rel (0) target = $region29
    $region28: #{tpu_custom_call.1} parent=1 // pred_region
      %90 = dma.done [#allocation3], 512
    $region29: #{tpu_custom_call.1} parent=1 // pred_fallthru
      _
    // Predicated region
    $region30: #{tpu_custom_call.1} parent=1 // pred_check
      _
    $region31: #{tpu_custom_call.1} parent=1 // pred_check_branch
      %92 = sbr.rel (0) target = $region33
    $region32: #{tpu_custom_call.1} parent=1 // pred_region
      %93 = dma.done [#allocation6], 512
    $region33: #{tpu_custom_call.1} parent=1 // pred_fallthru
      _
    // Predicated region
    $region34: #{tpu_custom_call.1} parent=1 // pred_check
      _
    $region35: #{tpu_custom_call.1} parent=1 // pred_check_branch
      %95 = sbr.rel (0) target = $region37
    $region36: #{tpu_custom_call.1} parent=1 // pred_region
      %96 = dma.done [#allocation6], 256
    $region37: #{tpu_custom_call.1} parent=1 // pred_fallthru
      _
    // Predicated region
    $region38: #{tpu_custom_call.1} parent=1 // pred_check
      _
    $region39: #{tpu_custom_call.1} parent=1 // pred_check_branch
      %98 = sbr.rel (0) target = $region41
    $region40: #{tpu_custom_call.1} parent=1 // pred_region
      %99 = dma.done [#allocation9], 1024
    $region41: #{tpu_custom_call.1} parent=1 // pred_fallthru
      _
    // Predicated region
    $region42: #{tpu_custom_call.1} parent=1 // pred_check
      _
    $region43: #{tpu_custom_call.1} parent=1 // pred_check_branch
      %101 = sbr.rel (0) target = $region45
    $region44: #{tpu_custom_call.1} parent=1 // pred_region
      %102 = dma.done [#allocation9], 384
    $region45: #{tpu_custom_call.1} parent=1 // pred_fallthru
      _
    // Predicated region
    $region46: #{tpu_custom_call.1} parent=1 // pred_check
      _
    $region47: #{tpu_custom_call.1} parent=1 // pred_check_branch
      %104 = sbr.rel (0) target = $region49
    $region48: #{tpu_custom_call.1} parent=1 // pred_region
      %105 = dma.done [#allocation12], 384
    $region49: #{tpu_custom_call.1} parent=1 // pred_fallthru
      _
    %v107 = vld [vmem:[#allocation7] sm:$0xf]
    %v108 = vld [vmem:[#allocation7 + $0x4] sm:$0xf]
    %s109 = scalar_lea.vmem [#allocation7], 8
    %v110 = vld [vmem:[%s109] sm:$0xf]
    %v111 = vld [vmem:[%s109 + $0x4] sm:$0xf]
    %v114 = vunpack.c.l.b16 %v107
    %v115 = vunpack.c.l.b16 %v108
    %v118 = vunpack.c.l.b16 %v110
    %v119 = vunpack.c.l.b16 %v111
    %v120 = vld [vmem:[#allocation2] sm:$0xf]
    %v121 = vld [vmem:[#allocation2 + $0x4] sm:$0xf]
    %v122 = vld [vmem:[#allocation2 + $0x8] sm:$0xf]
    %v123 = vld [vmem:[#allocation2 + $0xc] sm:$0xf]
    %v124 = vld [vmem:[#allocation2 + $0x10] sm:$0xf]
    %v125 = vld [vmem:[#allocation2 + $0x14] sm:$0xf]
    %v126 = vld [vmem:[#allocation2 + $0x18] sm:$0xf]
    %v127 = vld [vmem:[#allocation2 + $0x1c] sm:$0xf]
    %v128 = vpack.c.b16 %v114, %v114
    %v129 = vpack.c.b16 %v115, %v115
    %v132 = vmul.bf16 %v120, %v128
    %v133 = vmul.bf16 %v121, %v129
    %v134 = vmul.bf16 %v122, %v128
    %v135 = vmul.bf16 %v123, %v129
    %v136 = vmul.bf16 %v124, %v128
    %v137 = vmul.bf16 %v125, %v129
    %v138 = vmul.bf16 %v126, %v128
    %v139 = vmul.bf16 %v127, %v129
    %v140 = vld [vmem:[#allocation5] sm:$0xf]
    %v141 = vld [vmem:[#allocation5 + $0x4] sm:$0xf]
    %v142 = vld [vmem:[#allocation5 + $0x8] sm:$0xf]
    %v143 = vld [vmem:[#allocation5 + $0xc] sm:$0xf]
    %v144 = vld [vmem:[#allocation5 + $0x10] sm:$0xf]
    %v145 = vld [vmem:[#allocation5 + $0x14] sm:$0xf]
    %v146 = vld [vmem:[#allocation5 + $0x18] sm:$0xf]
    %v147 = vld [vmem:[#allocation5 + $0x1c] sm:$0xf]
    %v148 = vpack.c.b16 %v118, %v118
    %v149 = vpack.c.b16 %v119, %v119
    %v152 = vmul.bf16 %v140, %v148
    %v153 = vmul.bf16 %v141, %v149
    %v154 = vmul.bf16 %v142, %v148
    %v155 = vmul.bf16 %v143, %v149
    %v156 = vmul.bf16 %v144, %v148
    %v157 = vmul.bf16 %v145, %v149
    %v158 = vmul.bf16 %v146, %v148
    %v159 = vmul.bf16 %v147, %v149
    %v160 = vld [vmem:[#allocation11] sm:$0xf]
    %v161 = vld [vmem:[#allocation11 + $0x4] sm:$0xf]
    %s162 = scalar_lea.vmem [#allocation11], 8
    %v163 = vld [vmem:[%s162] sm:$0xf]
    %v164 = vld [vmem:[%s162 + $0x4] sm:$0xf]
    %s165 = scalar_lea.vmem [#allocation11], 16
    %v166 = vld [vmem:[%s165] sm:$0xf]
    %v167 = vld [vmem:[%s165 + $0x4] sm:$0xf]
    %v176 = vunpack.c.l.b16 %v132
    %v177 = vunpack.c.l.b16 %v133
    %v178 = vunpack.c.l.b16 %v134
    %v179 = vunpack.c.l.b16 %v135
    %v180 = vunpack.c.l.b16 %v136
    %v181 = vunpack.c.l.b16 %v137
    %v182 = vunpack.c.l.b16 %v138
    %v183 = vunpack.c.l.b16 %v139
    %v184 = vpack.c.b16 %v177, %v176
    %v185 = vpack.c.b16 %v179, %v178
    %v186 = vpack.c.b16 %v181, %v180
    %v187 = vpack.c.b16 %v183, %v182
    %v190 = vunpack.c.l.b16 %v160
    %v191 = vunpack.c.l.b16 %v161
    %v192 = vpack.c.b16 %v191, %v190
    %vm194 = vcmask 130048
    %v196 = vsel %vm194, %v184, 0
    %v199 = vsel %vm194, %v185, 0
    %v202 = vsel %vm194, %v186, 0
    %v205 = vsel %vm194, %v187, 0
    %207 = vmatprep.subr.bf16.mxu0 0
    %208 = vmatpush1.bf16.msra.mxu0 %v192
    %209 = vmatprep.subr.bf16.mxu0 0
    %210 = vmatpush1.bf16.msra.mxu0 0
    %211 = vmatprep.subr.bf16.mxu0 0
    %212 = vmatpush1.bf16.msra.mxu0 0
    %213 = vmatprep.subr.bf16.mxu0 0
    %214 = vmatpush1.bf16.msra.mxu0 0
    %215 = vmatprep.subr.bf16.mxu0 0
    %216 = vmatpush1.bf16.msra.mxu0 0
    %217 = vmatprep.subr.bf16.mxu0 0
    %218 = vmatpush1.bf16.msra.mxu0 0
    %219 = vmatprep.subr.bf16.mxu0 0
    %220 = vmatpush1.bf16.msra.mxu0 0
    %221 = vmatprep.subr.bf16.mxu0 0
    %222 = vmatpush1.bf16.msra.mxu0 0
    %223 = vmatprep.subr.bf16.mxu0 0
    %224 = vmatpush1.bf16.msra.mxu0 0
    %225 = vmatprep.subr.bf16.mxu0 0
    %226 = vmatpush1.bf16.msra.mxu0 0
    %227 = vmatprep.subr.bf16.mxu0 0
    %228 = vmatpush1.bf16.msra.mxu0 0
    %229 = vmatprep.subr.bf16.mxu0 0
    %230 = vmatpush1.bf16.msra.mxu0 0
    %231 = vmatprep.subr.bf16.mxu0 0
    %232 = vmatpush1.bf16.msra.mxu0 0
    %233 = vmatprep.subr.bf16.mxu0 0
    %234 = vmatpush1.bf16.msra.mxu0 0
    %235 = vmatprep.subr.bf16.mxu0 0
    %236 = vmatpush1.bf16.msra.mxu0 0
    %237 = vmatprep.subr.bf16.mxu0 0
    %238 = vmatpush1.bf16.msra.mxu0 0
    %239 = vmatprep.mubr.bf16.mxu0 0
    %240 = vmatmul.mubr.bf16.gmra.mrb[0].mxu0 %v196
    %v241 = vpop.f32.mrb[0].mxu0
    %v242 = vadd.f32 0.0, %v241
    %v243 = vpop.f32.mrb[0].mxu0
    %v244 = vpop.f32.mrb[0].mxu0
    %v245 = vadd.f32 0.0, %v244
    %v246 = vpop.f32.mrb[0].mxu0
    %247 = vmatprep.mubr.bf16.mxu0 0
    %248 = vmatmul.mubr.bf16.gmra.mrb[0].mxu0 %v199
    %v249 = vpop.f32.mrb[0].mxu0
    %v250 = vadd.f32 0.0, %v249
    %v251 = vpop.f32.mrb[0].mxu0
    %v252 = vpop.f32.mrb[0].mxu0
    %v253 = vadd.f32 0.0, %v252
    %v254 = vpop.f32.mrb[0].mxu0
    %255 = vmatprep.mubr.bf16.mxu0 0
    %256 = vmatmul.mubr.bf16.gmra.mrb[0].mxu0 %v202
    %v257 = vpop.f32.mrb[0].mxu0
    %v258 = vadd.f32 0.0, %v257
    %v259 = vpop.f32.mrb[0].mxu0
    %v260 = vpop.f32.mrb[0].mxu0
    %v261 = vadd.f32 0.0, %v260
    %v262 = vpop.f32.mrb[0].mxu0
    %263 = vmatprep.mubr.bf16.mxu0 0
    %264 = vmatmul.mubr.bf16.gmra.mrb[0].mxu0 %v205
    %v265 = vpop.f32.mrb[0].mxu0
    %v266 = vadd.f32 0.0, %v265
    %v267 = vpop.f32.mrb[0].mxu0
    %v268 = vpop.f32.mrb[0].mxu0
    %v269 = vadd.f32 0.0, %v268
    %v270 = vpop.f32.mrb[0].mxu0
    %271 = vdwg.mxu0
    %v280 = vunpack.c.l.b16 %v152
    %v281 = vunpack.c.l.b16 %v153
    %v282 = vunpack.c.l.b16 %v154
    %v283 = vunpack.c.l.b16 %v155
    %v284 = vunpack.c.l.b16 %v156
    %v285 = vunpack.c.l.b16 %v157
    %v286 = vunpack.c.l.b16 %v158
    %v287 = vunpack.c.l.b16 %v159
    %v288 = vpack.c.b16 %v281, %v280
    %v289 = vpack.c.b16 %v283, %v282
    %v290 = vpack.c.b16 %v285, %v284
    %v291 = vpack.c.b16 %v287, %v286
    %v294 = vunpack.c.l.b16 %v163
    %v295 = vunpack.c.l.b16 %v164
    %v296 = vpack.c.b16 %v295, %v294
    %v299 = vsel %vm194, %v288, 0
    %v302 = vsel %vm194, %v289, 0
    %v305 = vsel %vm194, %v290, 0
    %v308 = vsel %vm194, %v291, 0
    %310 = vmatprep.subr.bf16.mxu0 0
    %311 = vmatpush1.bf16.msra.mxu0 %v296
    %312 = vmatprep.subr.bf16.mxu0 0
    %313 = vmatpush1.bf16.msra.mxu0 0
    %314 = vmatprep.subr.bf16.mxu0 0
    %315 = vmatpush1.bf16.msra.mxu0 0
    %316 = vmatprep.subr.bf16.mxu0 0
    %317 = vmatpush1.bf16.msra.mxu0 0
    %318 = vmatprep.subr.bf16.mxu0 0
    %319 = vmatpush1.bf16.msra.mxu0 0
    %320 = vmatprep.subr.bf16.mxu0 0
    %321 = vmatpush1.bf16.msra.mxu0 0
    %322 = vmatprep.subr.bf16.mxu0 0
    %323 = vmatpush1.bf16.msra.mxu0 0
    %324 = vmatprep.subr.bf16.mxu0 0
    %325 = vmatpush1.bf16.msra.mxu0 0
    %326 = vmatprep.subr.bf16.mxu0 0
    %327 = vmatpush1.bf16.msra.mxu0 0
    %328 = vmatprep.subr.bf16.mxu0 0
    %329 = vmatpush1.bf16.msra.mxu0 0
    %330 = vmatprep.subr.bf16.mxu0 0
    %331 = vmatpush1.bf16.msra.mxu0 0
    %332 = vmatprep.subr.bf16.mxu0 0
    %333 = vmatpush1.bf16.msra.mxu0 0
    %334 = vmatprep.subr.bf16.mxu0 0
    %335 = vmatpush1.bf16.msra.mxu0 0
    %336 = vmatprep.subr.bf16.mxu0 0
    %337 = vmatpush1.bf16.msra.mxu0 0
    %338 = vmatprep.subr.bf16.mxu0 0
    %339 = vmatpush1.bf16.msra.mxu0 0
    %340 = vmatprep.subr.bf16.mxu0 0
    %341 = vmatpush1.bf16.msra.mxu0 0
    %342 = vmatprep.mubr.bf16.mxu0 0
    %343 = vmatmul.mubr.bf16.gmra.mrb[0].mxu0 %v299
    %v344 = vpop.f32.mrb[0].mxu0
    %v345 = vadd.f32 0.0, %v344
    %v346 = vpop.f32.mrb[0].mxu0
    %v347 = vpop.f32.mrb[0].mxu0
    %v348 = vadd.f32 0.0, %v347
    %v349 = vpop.f32.mrb[0].mxu0
    %350 = vmatprep.mubr.bf16.mxu0 0
    %351 = vmatmul.mubr.bf16.gmra.mrb[0].mxu0 %v302
    %v352 = vpop.f32.mrb[0].mxu0
    %v353 = vadd.f32 0.0, %v352
    %v354 = vpop.f32.mrb[0].mxu0
    %v355 = vpop.f32.mrb[0].mxu0
    %v356 = vadd.f32 0.0, %v355
    %v357 = vpop.f32.mrb[0].mxu0
    %358 = vmatprep.mubr.bf16.mxu0 0
    %359 = vmatmul.mubr.bf16.gmra.mrb[0].mxu0 %v305
    %v360 = vpop.f32.mrb[0].mxu0
    %v361 = vadd.f32 0.0, %v360
    %v362 = vpop.f32.mrb[0].mxu0
    %v363 = vpop.f32.mrb[0].mxu0
    %v364 = vadd.f32 0.0, %v363
    %v365 = vpop.f32.mrb[0].mxu0
    %366 = vmatprep.mubr.bf16.mxu0 0
    %367 = vmatmul.mubr.bf16.gmra.mrb[0].mxu0 %v308
    %v368 = vpop.f32.mrb[0].mxu0
    %v369 = vadd.f32 0.0, %v368
    %v370 = vpop.f32.mrb[0].mxu0
    %v371 = vpop.f32.mrb[0].mxu0
    %v372 = vadd.f32 0.0, %v371
    %v373 = vpop.f32.mrb[0].mxu0
    %374 = vdwg.mxu0
    %v375 = vadd.bf16 %v132, %v152
    %v376 = vadd.bf16 %v133, %v153
    %v377 = vadd.bf16 %v134, %v154
    %v378 = vadd.bf16 %v135, %v155
    %v379 = vadd.bf16 %v136, %v156
    %v380 = vadd.bf16 %v137, %v157
    %v381 = vadd.bf16 %v138, %v158
    %v382 = vadd.bf16 %v139, %v159
    %v391 = vunpack.c.l.b16 %v375
    %v392 = vunpack.c.l.b16 %v376
    %v393 = vunpack.c.l.b16 %v377
    %v394 = vunpack.c.l.b16 %v378
    %v395 = vunpack.c.l.b16 %v379
    %v396 = vunpack.c.l.b16 %v380
    %v397 = vunpack.c.l.b16 %v381
    %v398 = vunpack.c.l.b16 %v382
    %v399 = vpack.c.b16 %v392, %v391
    %v400 = vpack.c.b16 %v394, %v393
    %v401 = vpack.c.b16 %v396, %v395
    %v402 = vpack.c.b16 %v398, %v397
    %v405 = vunpack.c.l.b16 %v166
    %v406 = vunpack.c.l.b16 %v167
    %v407 = vpack.c.b16 %v406, %v405
    %v410 = vsel %vm194, %v399, 0
    %v413 = vsel %vm194, %v400, 0
    %v416 = vsel %vm194, %v401, 0
    %v419 = vsel %vm194, %v402, 0
    %421 = vmatprep.subr.bf16.mxu0 0
    %422 = vmatpush1.bf16.msra.mxu0 %v407
    %423 = vmatprep.subr.bf16.mxu0 0
    %424 = vmatpush1.bf16.msra.mxu0 0
    %425 = vmatprep.subr.bf16.mxu0 0
    %426 = vmatpush1.bf16.msra.mxu0 0
    %427 = vmatprep.subr.bf16.mxu0 0
    %428 = vmatpush1.bf16.msra.mxu0 0
    %429 = vmatprep.subr.bf16.mxu0 0
    %430 = vmatpush1.bf16.msra.mxu0 0
    %431 = vmatprep.subr.bf16.mxu0 0
    %432 = vmatpush1.bf16.msra.mxu0 0
    %433 = vmatprep.subr.bf16.mxu0 0
    %434 = vmatpush1.bf16.msra.mxu0 0
    %435 = vmatprep.subr.bf16.mxu0 0
    %436 = vmatpush1.bf16.msra.mxu0 0
    %437 = vmatprep.subr.bf16.mxu0 0
    %438 = vmatpush1.bf16.msra.mxu0 0
    %439 = vmatprep.subr.bf16.mxu0 0
    %440 = vmatpush1.bf16.msra.mxu0 0
    %441 = vmatprep.subr.bf16.mxu0 0
    %442 = vmatpush1.bf16.msra.mxu0 0
    %443 = vmatprep.subr.bf16.mxu0 0
    %444 = vmatpush1.bf16.msra.mxu0 0
    %445 = vmatprep.subr.bf16.mxu0 0
    %446 = vmatpush1.bf16.msra.mxu0 0
    %447 = vmatprep.subr.bf16.mxu0 0
    %448 = vmatpush1.bf16.msra.mxu0 0
    %449 = vmatprep.subr.bf16.mxu0 0
    %450 = vmatpush1.bf16.msra.mxu0 0
    %451 = vmatprep.subr.bf16.mxu0 0
    %452 = vmatpush1.bf16.msra.mxu0 0
    %453 = vmatprep.mubr.bf16.mxu0 0
    %454 = vmatmul.mubr.bf16.gmra.mrb[0].mxu0 %v410
    %v455 = vpop.f32.mrb[0].mxu0
    %v456 = vadd.f32 0.0, %v455
    %v457 = vpop.f32.mrb[0].mxu0
    %v458 = vpop.f32.mrb[0].mxu0
    %v459 = vadd.f32 0.0, %v458
    %v460 = vpop.f32.mrb[0].mxu0
    %461 = vmatprep.mubr.bf16.mxu0 0
    %462 = vmatmul.mubr.bf16.gmra.mrb[0].mxu0 %v413
    %v463 = vpop.f32.mrb[0].mxu0
    %v464 = vadd.f32 0.0, %v463
    %v465 = vpop.f32.mrb[0].mxu0
    %v466 = vpop.f32.mrb[0].mxu0
    %v467 = vadd.f32 0.0, %v466
    %v468 = vpop.f32.mrb[0].mxu0
    %469 = vmatprep.mubr.bf16.mxu0 0
    %470 = vmatmul.mubr.bf16.gmra.mrb[0].mxu0 %v416
    %v471 = vpop.f32.mrb[0].mxu0
    %v472 = vadd.f32 0.0, %v471
    %v473 = vpop.f32.mrb[0].mxu0
    %v474 = vpop.f32.mrb[0].mxu0
    %v475 = vadd.f32 0.0, %v474
    %v476 = vpop.f32.mrb[0].mxu0
    %477 = vmatprep.mubr.bf16.mxu0 0
    %478 = vmatmul.mubr.bf16.gmra.mrb[0].mxu0 %v419
    %v479 = vpop.f32.mrb[0].mxu0
    %v480 = vadd.f32 0.0, %v479
    %v481 = vpop.f32.mrb[0].mxu0
    %v482 = vpop.f32.mrb[0].mxu0
    %v483 = vadd.f32 0.0, %v482
    %v484 = vpop.f32.mrb[0].mxu0
    %485 = vdwg.mxu0
    %v486 = vsub.f32 %v242, %v345
    %v487 = vsub.f32 %v245, %v348
    %v488 = vsub.f32 %v250, %v353
    %v489 = vsub.f32 %v253, %v356
    %v490 = vsub.f32 %v258, %v361
    %v491 = vsub.f32 %v261, %v364
    %v492 = vsub.f32 %v266, %v369
    %v493 = vsub.f32 %v269, %v372
    %v494 = vsub.f32 %v456, %v242
    %v495 = vsub.f32 %v459, %v245
    %v496 = vsub.f32 %v464, %v250
    %v497 = vsub.f32 %v467, %v253
    %v498 = vsub.f32 %v472, %v258
    %v499 = vsub.f32 %v475, %v261
    %v500 = vsub.f32 %v480, %v266
    %v501 = vsub.f32 %v483, %v269
    %v502 = vsub.f32 %v494, %v345
    %v503 = vsub.f32 %v495, %v348
    %v504 = vsub.f32 %v496, %v353
    %v505 = vsub.f32 %v497, %v356
    %v506 = vsub.f32 %v498, %v361
    %v507 = vsub.f32 %v499, %v364
    %v508 = vsub.f32 %v500, %v369
    %v509 = vsub.f32 %v501, %v372
    %v510 = vld [vmem:[#allocation10] sm:$0xf]
    %v511 = vld [vmem:[#allocation10 + $0x4] sm:$0xf]
    %s512 = scalar_lea.vmem [#allocation10], 8
    %v513 = vld [vmem:[%s512] sm:$0xf]
    %v514 = vld [vmem:[%s512 + $0x4] sm:$0xf]
    %s515 = scalar_lea.vmem [#allocation10], 16
    %v516 = vld [vmem:[%s515] sm:$0xf]
    %v517 = vld [vmem:[%s515 + $0x4] sm:$0xf]
    %v518 = vld [vmem:[#allocation8] sm:$0xf]
    %v519 = vld [vmem:[#allocation8 + $0x4] sm:$0xf]
    %v520 = vld [vmem:[#allocation8 + $0x8] sm:$0xf]
    %v521 = vld [vmem:[#allocation8 + $0xc] sm:$0xf]
    %v522 = vld [vmem:[#allocation8 + $0x10] sm:$0xf]
    %v523 = vld [vmem:[#allocation8 + $0x14] sm:$0xf]
    %v524 = vld [vmem:[#allocation8 + $0x18] sm:$0xf]
    %v525 = vld [vmem:[#allocation8 + $0x1c] sm:$0xf]
    %v526 = vld [vmem:[#allocation8 + $0x20] sm:$0xf]
    %v527 = vld [vmem:[#allocation8 + $0x24] sm:$0xf]
    %v528 = vld [vmem:[#allocation8 + $0x28] sm:$0xf]
    %v529 = vld [vmem:[#allocation8 + $0x2c] sm:$0xf]
    %v530 = vld [vmem:[#allocation8 + $0x30] sm:$0xf]
    %v531 = vld [vmem:[#allocation8 + $0x34] sm:$0xf]
    %v532 = vld [vmem:[#allocation8 + $0x38] sm:$0xf]
    %v533 = vld [vmem:[#allocation8 + $0x3c] sm:$0xf]
    %v534 = vpack.c.bf16 %v487, %v486
    %v537 = vunpack.c.l.b16 %v510
    %v538 = vunpack.c.l.b16 %v511
    %v539 = vpack.c.b16 %v538, %v537
    %v541 = vsel %vm194, %v539, 0
    %543 = vmatprep.subr.bf16.mxu0 0
    %544 = vmatpush1.bf16.msra.mxu0 %v534
    %545 = vmatprep.subr.bf16.mxu0 0
    %546 = vmatpush1.bf16.msra.mxu0 0
    %547 = vmatprep.subr.bf16.mxu0 0
    %548 = vmatpush1.bf16.msra.mxu0 0
    %549 = vmatprep.subr.bf16.mxu0 0
    %550 = vmatpush1.bf16.msra.mxu0 0
    %551 = vmatprep.subr.bf16.mxu0 0
    %552 = vmatpush1.bf16.msra.mxu0 0
    %553 = vmatprep.subr.bf16.mxu0 0
    %554 = vmatpush1.bf16.msra.mxu0 0
    %555 = vmatprep.subr.bf16.mxu0 0
    %556 = vmatpush1.bf16.msra.mxu0 0
    %557 = vmatprep.subr.bf16.mxu0 0
    %558 = vmatpush1.bf16.msra.mxu0 0
    %559 = vmatprep.subr.bf16.mxu0 0
    %560 = vmatpush1.bf16.msra.mxu0 0
    %561 = vmatprep.subr.bf16.mxu0 0
    %562 = vmatpush1.bf16.msra.mxu0 0
    %563 = vmatprep.subr.bf16.mxu0 0
    %564 = vmatpush1.bf16.msra.mxu0 0
    %565 = vmatprep.subr.bf16.mxu0 0
    %566 = vmatpush1.bf16.msra.mxu0 0
    %567 = vmatprep.subr.bf16.mxu0 0
    %568 = vmatpush1.bf16.msra.mxu0 0
    %569 = vmatprep.subr.bf16.mxu0 0
    %570 = vmatpush1.bf16.msra.mxu0 0
    %571 = vmatprep.subr.bf16.mxu0 0
    %572 = vmatpush1.bf16.msra.mxu0 0
    %573 = vmatprep.subr.bf16.mxu0 0
    %574 = vmatpush1.bf16.msra.mxu0 0
    %575 = vmatprep.mubr.bf16.mxu0 0
    %576 = vmatmul.mubr.bf16.gmra.mrb[0].mxu0 %v541
    %v577 = vpop.f32.mrb[0].mxu0
    %v578 = vadd.f32 0.0, %v577
    %v579 = vpop.f32.mrb[0].mxu0
    %v580 = vpop.f32.mrb[0].mxu0
    %v581 = vadd.f32 0.0, %v580
    %v582 = vpop.f32.mrb[0].mxu0
    %583 = vdwg.mxu0
    %v584 = vpack.c.bf16 %v503, %v502
    %v587 = vunpack.c.l.b16 %v513
    %v588 = vunpack.c.l.b16 %v514
    %v589 = vpack.c.b16 %v588, %v587
    %v591 = vsel %vm194, %v589, 0
    %593 = vmatprep.subr.bf16.mxu0 0
    %594 = vmatpush1.bf16.msra.mxu0 %v584
    %595 = vmatprep.subr.bf16.mxu0 0
    %596 = vmatpush1.bf16.msra.mxu0 0
    %597 = vmatprep.subr.bf16.mxu0 0
    %598 = vmatpush1.bf16.msra.mxu0 0
    %599 = vmatprep.subr.bf16.mxu0 0
    %600 = vmatpush1.bf16.msra.mxu0 0
    %601 = vmatprep.subr.bf16.mxu0 0
    %602 = vmatpush1.bf16.msra.mxu0 0
    %603 = vmatprep.subr.bf16.mxu0 0
    %604 = vmatpush1.bf16.msra.mxu0 0
    %605 = vmatprep.subr.bf16.mxu0 0
    %606 = vmatpush1.bf16.msra.mxu0 0
    %607 = vmatprep.subr.bf16.mxu0 0
    %608 = vmatpush1.bf16.msra.mxu0 0
    %609 = vmatprep.subr.bf16.mxu0 0
    %610 = vmatpush1.bf16.msra.mxu0 0
    %611 = vmatprep.subr.bf16.mxu0 0
    %612 = vmatpush1.bf16.msra.mxu0 0
    %613 = vmatprep.subr.bf16.mxu0 0
    %614 = vmatpush1.bf16.msra.mxu0 0
    %615 = vmatprep.subr.bf16.mxu0 0
    %616 = vmatpush1.bf16.msra.mxu0 0
    %617 = vmatprep.subr.bf16.mxu0 0
    %618 = vmatpush1.bf16.msra.mxu0 0
    %619 = vmatprep.subr.bf16.mxu0 0
    %620 = vmatpush1.bf16.msra.mxu0 0
    %621 = vmatprep.subr.bf16.mxu0 0
    %622 = vmatpush1.bf16.msra.mxu0 0
    %623 = vmatprep.subr.bf16.mxu0 0
    %624 = vmatpush1.bf16.msra.mxu0 0
    %625 = vmatprep.mubr.bf16.mxu0 0
    %626 = vmatmul.mubr.bf16.gmra.mrb[0].mxu0 %v591
    %v627 = vpop.f32.mrb[0].mxu0
    %v628 = vadd.f32 0.0, %v627
    %v629 = vpop.f32.mrb[0].mxu0
    %v630 = vpop.f32.mrb[0].mxu0
    %v631 = vadd.f32 0.0, %v630
    %v632 = vpop.f32.mrb[0].mxu0
    %633 = vdwg.mxu0
    %v634 = vadd.f32 %v486, %v502
    %v635 = vadd.f32 %v487, %v503
    %v636 = vpack.c.bf16 %v635, %v634
    %v639 = vunpack.c.l.b16 %v516
    %v640 = vunpack.c.l.b16 %v517
    %v641 = vpack.c.b16 %v640, %v639
    %v643 = vsel %vm194, %v641, 0
    %645 = vmatprep.subr.bf16.mxu0 0
    %646 = vmatpush1.bf16.msra.mxu0 %v636
    %647 = vmatprep.subr.bf16.mxu0 0
    %648 = vmatpush1.bf16.msra.mxu0 0
    %649 = vmatprep.subr.bf16.mxu0 0
    %650 = vmatpush1.bf16.msra.mxu0 0
    %651 = vmatprep.subr.bf16.mxu0 0
    %652 = vmatpush1.bf16.msra.mxu0 0
    %653 = vmatprep.subr.bf16.mxu0 0
    %654 = vmatpush1.bf16.msra.mxu0 0
    %655 = vmatprep.subr.bf16.mxu0 0
    %656 = vmatpush1.bf16.msra.mxu0 0
    %657 = vmatprep.subr.bf16.mxu0 0
    %658 = vmatpush1.bf16.msra.mxu0 0
    %659 = vmatprep.subr.bf16.mxu0 0
    %660 = vmatpush1.bf16.msra.mxu0 0
    %661 = vmatprep.subr.bf16.mxu0 0
    %662 = vmatpush1.bf16.msra.mxu0 0
    %663 = vmatprep.subr.bf16.mxu0 0
    %664 = vmatpush1.bf16.msra.mxu0 0
    %665 = vmatprep.subr.bf16.mxu0 0
    %666 = vmatpush1.bf16.msra.mxu0 0
    %667 = vmatprep.subr.bf16.mxu0 0
    %668 = vmatpush1.bf16.msra.mxu0 0
    %669 = vmatprep.subr.bf16.mxu0 0
    %670 = vmatpush1.bf16.msra.mxu0 0
    %671 = vmatprep.subr.bf16.mxu0 0
    %672 = vmatpush1.bf16.msra.mxu0 0
    %673 = vmatprep.subr.bf16.mxu0 0
    %674 = vmatpush1.bf16.msra.mxu0 0
    %675 = vmatprep.subr.bf16.mxu0 0
    %676 = vmatpush1.bf16.msra.mxu0 0
    %677 = vmatprep.mubr.bf16.mxu0 0
    %678 = vmatmul.mubr.bf16.gmra.mrb[0].mxu0 %v643
    %v679 = vpop.f32.mrb[0].mxu0
    %v680 = vadd.f32 0.0, %v679
    %v681 = vpop.f32.mrb[0].mxu0
    %v682 = vpop.f32.mrb[0].mxu0
    %v683 = vadd.f32 0.0, %v682
    %v684 = vpop.f32.mrb[0].mxu0
    %685 = vdwg.mxu0
    %v686 = vsub.f32 %v578, %v628
    %v687 = vsub.f32 %v581, %v631
    %v688 = vsub.f32 %v680, %v578
    %v689 = vsub.f32 %v683, %v581
    %v690 = vsub.f32 %v688, %v628
    %v691 = vsub.f32 %v689, %v631
    %v692 = vunpack.c.l.bf16 %v518
    %v693 = vunpack.c.l.bf16 %v519
    %v694 = vunpack.c.l.bf16 %v520
    %v695 = vunpack.c.l.bf16 %v521
    %v696 = vmul.f32 %v686, %v692
    %v697 = vmul.f32 %v687, %v693
    %v698 = vadd.f32 %v696, 0.0
    %v699 = vadd.f32 %v697, 0.0
    %v700 = vmul.f32 %v690, %v694
    %v701 = vmul.f32 %v691, %v695
    %v702 = vadd.f32 %v698, %v700
    %v703 = vadd.f32 %v699, %v701
    %v704 = vmul.f32 %v690, %v692
    %v705 = vmul.f32 %v691, %v693
    %v706 = vadd.f32 %v704, 0.0
    %v707 = vadd.f32 %v705, 0.0
    %v708 = vmul.f32 %v686, %v694
    %v709 = vmul.f32 %v687, %v695
    %v710 = vsub.f32 %v706, %v708
    %v711 = vsub.f32 %v707, %v709
    %v712 = vpack.c.bf16 %v489, %v488
    %713 = vmatprep.subr.bf16.mxu0 0
    %714 = vmatpush1.bf16.msra.mxu0 %v712
    %715 = vmatprep.subr.bf16.mxu0 0
    %716 = vmatpush1.bf16.msra.mxu0 0
    %717 = vmatprep.subr.bf16.mxu0 0
    %718 = vmatpush1.bf16.msra.mxu0 0
    %719 = vmatprep.subr.bf16.mxu0 0
    %720 = vmatpush1.bf16.msra.mxu0 0
    %721 = vmatprep.subr.bf16.mxu0 0
    %722 = vmatpush1.bf16.msra.mxu0 0
    %723 = vmatprep.subr.bf16.mxu0 0
    %724 = vmatpush1.bf16.msra.mxu0 0
    %725 = vmatprep.subr.bf16.mxu0 0
    %726 = vmatpush1.bf16.msra.mxu0 0
    %727 = vmatprep.subr.bf16.mxu0 0
    %728 = vmatpush1.bf16.msra.mxu0 0
    %729 = vmatprep.subr.bf16.mxu0 0
    %730 = vmatpush1.bf16.msra.mxu0 0
    %731 = vmatprep.subr.bf16.mxu0 0
    %732 = vmatpush1.bf16.msra.mxu0 0
    %733 = vmatprep.subr.bf16.mxu0 0
    %734 = vmatpush1.bf16.msra.mxu0 0
    %735 = vmatprep.subr.bf16.mxu0 0
    %736 = vmatpush1.bf16.msra.mxu0 0
    %737 = vmatprep.subr.bf16.mxu0 0
    %738 = vmatpush1.bf16.msra.mxu0 0
    %739 = vmatprep.subr.bf16.mxu0 0
    %740 = vmatpush1.bf16.msra.mxu0 0
    %741 = vmatprep.subr.bf16.mxu0 0
    %742 = vmatpush1.bf16.msra.mxu0 0
    %743 = vmatprep.subr.bf16.mxu0 0
    %744 = vmatpush1.bf16.msra.mxu0 0
    %745 = vmatprep.mubr.bf16.mxu0 0
    %746 = vmatmul.mubr.bf16.gmra.mrb[0].mxu0 %v541
    %v747 = vpop.f32.mrb[0].mxu0
    %v748 = vadd.f32 0.0, %v747
    %v749 = vpop.f32.mrb[0].mxu0
    %v750 = vpop.f32.mrb[0].mxu0
    %v751 = vadd.f32 0.0, %v750
    %v752 = vpop.f32.mrb[0].mxu0
    %753 = vdwg.mxu0
    %v754 = vpack.c.bf16 %v505, %v504
    %755 = vmatprep.subr.bf16.mxu0 0
    %756 = vmatpush1.bf16.msra.mxu0 %v754
    %757 = vmatprep.subr.bf16.mxu0 0
    %758 = vmatpush1.bf16.msra.mxu0 0
    %759 = vmatprep.subr.bf16.mxu0 0
    %760 = vmatpush1.bf16.msra.mxu0 0
    %761 = vmatprep.subr.bf16.mxu0 0
    %762 = vmatpush1.bf16.msra.mxu0 0
    %763 = vmatprep.subr.bf16.mxu0 0
    %764 = vmatpush1.bf16.msra.mxu0 0
    %765 = vmatprep.subr.bf16.mxu0 0
    %766 = vmatpush1.bf16.msra.mxu0 0
    %767 = vmatprep.subr.bf16.mxu0 0
    %768 = vmatpush1.bf16.msra.mxu0 0
    %769 = vmatprep.subr.bf16.mxu0 0
    %770 = vmatpush1.bf16.msra.mxu0 0
    %771 = vmatprep.subr.bf16.mxu0 0
    %772 = vmatpush1.bf16.msra.mxu0 0
    %773 = vmatprep.subr.bf16.mxu0 0
    %774 = vmatpush1.bf16.msra.mxu0 0
    %775 = vmatprep.subr.bf16.mxu0 0
    %776 = vmatpush1.bf16.msra.mxu0 0
    %777 = vmatprep.subr.bf16.mxu0 0
    %778 = vmatpush1.bf16.msra.mxu0 0
    %779 = vmatprep.subr.bf16.mxu0 0
    %780 = vmatpush1.bf16.msra.mxu0 0
    %781 = vmatprep.subr.bf16.mxu0 0
    %782 = vmatpush1.bf16.msra.mxu0 0
    %783 = vmatprep.subr.bf16.mxu0 0
    %784 = vmatpush1.bf16.msra.mxu0 0
    %785 = vmatprep.subr.bf16.mxu0 0
    %786 = vmatpush1.bf16.msra.mxu0 0
    %787 = vmatprep.mubr.bf16.mxu0 0
    %788 = vmatmul.mubr.bf16.gmra.mrb[0].mxu0 %v591
    %v789 = vpop.f32.mrb[0].mxu0
    %v790 = vadd.f32 0.0, %v789
    %v791 = vpop.f32.mrb[0].mxu0
    %v792 = vpop.f32.mrb[0].mxu0
    %v793 = vadd.f32 0.0, %v792
    %v794 = vpop.f32.mrb[0].mxu0
    %795 = vdwg.mxu0
    %v796 = vadd.f32 %v488, %v504
    %v797 = vadd.f32 %v489, %v505
    %v798 = vpack.c.bf16 %v797, %v796
    %799 = vmatprep.subr.bf16.mxu0 0
    %800 = vmatpush1.bf16.msra.mxu0 %v798
    %801 = vmatprep.subr.bf16.mxu0 0
    %802 = vmatpush1.bf16.msra.mxu0 0
    %803 = vmatprep.subr.bf16.mxu0 0
    %804 = vmatpush1.bf16.msra.mxu0 0
    %805 = vmatprep.subr.bf16.mxu0 0
    %806 = vmatpush1.bf16.msra.mxu0 0
    %807 = vmatprep.subr.bf16.mxu0 0
    %808 = vmatpush1.bf16.msra.mxu0 0
    %809 = vmatprep.subr.bf16.mxu0 0
    %810 = vmatpush1.bf16.msra.mxu0 0
    %811 = vmatprep.subr.bf16.mxu0 0
    %812 = vmatpush1.bf16.msra.mxu0 0
    %813 = vmatprep.subr.bf16.mxu0 0
    %814 = vmatpush1.bf16.msra.mxu0 0
    %815 = vmatprep.subr.bf16.mxu0 0
    %816 = vmatpush1.bf16.msra.mxu0 0
    %817 = vmatprep.subr.bf16.mxu0 0
    %818 = vmatpush1.bf16.msra.mxu0 0
    %819 = vmatprep.subr.bf16.mxu0 0
    %820 = vmatpush1.bf16.msra.mxu0 0
    %821 = vmatprep.subr.bf16.mxu0 0
    %822 = vmatpush1.bf16.msra.mxu0 0
    %823 = vmatprep.subr.bf16.mxu0 0
    %824 = vmatpush1.bf16.msra.mxu0 0
    %825 = vmatprep.subr.bf16.mxu0 0
    %826 = vmatpush1.bf16.msra.mxu0 0
    %827 = vmatprep.subr.bf16.mxu0 0
    %828 = vmatpush1.bf16.msra.mxu0 0
    %829 = vmatprep.subr.bf16.mxu0 0
    %830 = vmatpush1.bf16.msra.mxu0 0
    %831 = vmatprep.mubr.bf16.mxu0 0
    %832 = vmatmul.mubr.bf16.gmra.mrb[0].mxu0 %v643
    %v833 = vpop.f32.mrb[0].mxu0
    %v834 = vadd.f32 0.0, %v833
    %v835 = vpop.f32.mrb[0].mxu0
    %v836 = vpop.f32.mrb[0].mxu0
    %v837 = vadd.f32 0.0, %v836
    %v838 = vpop.f32.mrb[0].mxu0
    %839 = vdwg.mxu0
    %v840 = vsub.f32 %v748, %v790
    %v841 = vsub.f32 %v751, %v793
    %v842 = vsub.f32 %v834, %v748
    %v843 = vsub.f32 %v837, %v751
    %v844 = vsub.f32 %v842, %v790
    %v845 = vsub.f32 %v843, %v793
    %v846 = vunpack.c.l.bf16 %v522
    %v847 = vunpack.c.l.bf16 %v523
    %v848 = vunpack.c.l.bf16 %v524
    %v849 = vunpack.c.l.bf16 %v525
    %v850 = vmul.f32 %v840, %v846
    %v851 = vmul.f32 %v841, %v847
    %v852 = vadd.f32 %v702, %v850
    %v853 = vadd.f32 %v703, %v851
    %v854 = vmul.f32 %v844, %v848
    %v855 = vmul.f32 %v845, %v849
    %v856 = vadd.f32 %v852, %v854
    %v857 = vadd.f32 %v853, %v855
    %v858 = vmul.f32 %v844, %v846
    %v859 = vmul.f32 %v845, %v847
    %v860 = vadd.f32 %v710, %v858
    %v861 = vadd.f32 %v711, %v859
    %v862 = vmul.f32 %v840, %v848
    %v863 = vmul.f32 %v841, %v849
    %v864 = vsub.f32 %v860, %v862
    %v865 = vsub.f32 %v861, %v863
    %v866 = vpack.c.bf16 %v491, %v490
    %867 = vmatprep.subr.bf16.mxu0 0
    %868 = vmatpush1.bf16.msra.mxu0 %v866
    %869 = vmatprep.subr.bf16.mxu0 0
    %870 = vmatpush1.bf16.msra.mxu0 0
    %871 = vmatprep.subr.bf16.mxu0 0
    %872 = vmatpush1.bf16.msra.mxu0 0
    %873 = vmatprep.subr.bf16.mxu0 0
    %874 = vmatpush1.bf16.msra.mxu0 0
    %875 = vmatprep.subr.bf16.mxu0 0
    %876 = vmatpush1.bf16.msra.mxu0 0
    %877 = vmatprep.subr.bf16.mxu0 0
    %878 = vmatpush1.bf16.msra.mxu0 0
    %879 = vmatprep.subr.bf16.mxu0 0
    %880 = vmatpush1.bf16.msra.mxu0 0
    %881 = vmatprep.subr.bf16.mxu0 0
    %882 = vmatpush1.bf16.msra.mxu0 0
    %883 = vmatprep.subr.bf16.mxu0 0
    %884 = vmatpush1.bf16.msra.mxu0 0
    %885 = vmatprep.subr.bf16.mxu0 0
    %886 = vmatpush1.bf16.msra.mxu0 0
    %887 = vmatprep.subr.bf16.mxu0 0
    %888 = vmatpush1.bf16.msra.mxu0 0
    %889 = vmatprep.subr.bf16.mxu0 0
    %890 = vmatpush1.bf16.msra.mxu0 0
    %891 = vmatprep.subr.bf16.mxu0 0
    %892 = vmatpush1.bf16.msra.mxu0 0
    %893 = vmatprep.subr.bf16.mxu0 0
    %894 = vmatpush1.bf16.msra.mxu0 0
    %895 = vmatprep.subr.bf16.mxu0 0
    %896 = vmatpush1.bf16.msra.mxu0 0
    %897 = vmatprep.subr.bf16.mxu0 0
    %898 = vmatpush1.bf16.msra.mxu0 0
    %899 = vmatprep.mubr.bf16.mxu0 0
    %900 = vmatmul.mubr.bf16.gmra.mrb[0].mxu0 %v541
    %v901 = vpop.f32.mrb[0].mxu0
    %v902 = vadd.f32 0.0, %v901
    %v903 = vpop.f32.mrb[0].mxu0
    %v904 = vpop.f32.mrb[0].mxu0
    %v905 = vadd.f32 0.0, %v904
    %v906 = vpop.f32.mrb[0].mxu0
    %907 = vdwg.mxu0
    %v908 = vpack.c.bf16 %v507, %v506
    %909 = vmatprep.subr.bf16.mxu0 0
    %910 = vmatpush1.bf16.msra.mxu0 %v908
    %911 = vmatprep.subr.bf16.mxu0 0
    %912 = vmatpush1.bf16.msra.mxu0 0
    %913 = vmatprep.subr.bf16.mxu0 0
    %914 = vmatpush1.bf16.msra.mxu0 0
    %915 = vmatprep.subr.bf16.mxu0 0
    %916 = vmatpush1.bf16.msra.mxu0 0
    %917 = vmatprep.subr.bf16.mxu0 0
    %918 = vmatpush1.bf16.msra.mxu0 0
    %919 = vmatprep.subr.bf16.mxu0 0
    %920 = vmatpush1.bf16.msra.mxu0 0
    %921 = vmatprep.subr.bf16.mxu0 0
    %922 = vmatpush1.bf16.msra.mxu0 0
    %923 = vmatprep.subr.bf16.mxu0 0
    %924 = vmatpush1.bf16.msra.mxu0 0
    %925 = vmatprep.subr.bf16.mxu0 0
    %926 = vmatpush1.bf16.msra.mxu0 0
    %927 = vmatprep.subr.bf16.mxu0 0
    %928 = vmatpush1.bf16.msra.mxu0 0
    %929 = vmatprep.subr.bf16.mxu0 0
    %930 = vmatpush1.bf16.msra.mxu0 0
    %931 = vmatprep.subr.bf16.mxu0 0
    %932 = vmatpush1.bf16.msra.mxu0 0
    %933 = vmatprep.subr.bf16.mxu0 0
    %934 = vmatpush1.bf16.msra.mxu0 0
    %935 = vmatprep.subr.bf16.mxu0 0
    %936 = vmatpush1.bf16.msra.mxu0 0
    %937 = vmatprep.subr.bf16.mxu0 0
    %938 = vmatpush1.bf16.msra.mxu0 0
    %939 = vmatprep.subr.bf16.mxu0 0
    %940 = vmatpush1.bf16.msra.mxu0 0
    %941 = vmatprep.mubr.bf16.mxu0 0
    %942 = vmatmul.mubr.bf16.gmra.mrb[0].mxu0 %v591
    %v943 = vpop.f32.mrb[0].mxu0
    %v944 = vadd.f32 0.0, %v943
    %v945 = vpop.f32.mrb[0].mxu0
    %v946 = vpop.f32.mrb[0].mxu0
    %v947 = vadd.f32 0.0, %v946
    %v948 = vpop.f32.mrb[0].mxu0
    %949 = vdwg.mxu0
    %v950 = vadd.f32 %v490, %v506
    %v951 = vadd.f32 %v491, %v507
    %v952 = vpack.c.bf16 %v951, %v950
    %953 = vmatprep.subr.bf16.mxu0 0
    %954 = vmatpush1.bf16.msra.mxu0 %v952
    %955 = vmatprep.subr.bf16.mxu0 0
    %956 = vmatpush1.bf16.msra.mxu0 0
    %957 = vmatprep.subr.bf16.mxu0 0
    %958 = vmatpush1.bf16.msra.mxu0 0
    %959 = vmatprep.subr.bf16.mxu0 0
    %960 = vmatpush1.bf16.msra.mxu0 0
    %961 = vmatprep.subr.bf16.mxu0 0
    %962 = vmatpush1.bf16.msra.mxu0 0
    %963 = vmatprep.subr.bf16.mxu0 0
    %964 = vmatpush1.bf16.msra.mxu0 0
    %965 = vmatprep.subr.bf16.mxu0 0
    %966 = vmatpush1.bf16.msra.mxu0 0
    %967 = vmatprep.subr.bf16.mxu0 0
    %968 = vmatpush1.bf16.msra.mxu0 0
    %969 = vmatprep.subr.bf16.mxu0 0
    %970 = vmatpush1.bf16.msra.mxu0 0
    %971 = vmatprep.subr.bf16.mxu0 0
    %972 = vmatpush1.bf16.msra.mxu0 0
    %973 = vmatprep.subr.bf16.mxu0 0
    %974 = vmatpush1.bf16.msra.mxu0 0
    %975 = vmatprep.subr.bf16.mxu0 0
    %976 = vmatpush1.bf16.msra.mxu0 0
    %977 = vmatprep.subr.bf16.mxu0 0
    %978 = vmatpush1.bf16.msra.mxu0 0
    %979 = vmatprep.subr.bf16.mxu0 0
    %980 = vmatpush1.bf16.msra.mxu0 0
    %981 = vmatprep.subr.bf16.mxu0 0
    %982 = vmatpush1.bf16.msra.mxu0 0
    %983 = vmatprep.subr.bf16.mxu0 0
    %984 = vmatpush1.bf16.msra.mxu0 0
    %985 = vmatprep.mubr.bf16.mxu0 0
    %986 = vmatmul.mubr.bf16.gmra.mrb[0].mxu0 %v643
    %v987 = vpop.f32.mrb[0].mxu0
    %v988 = vadd.f32 0.0, %v987
    %v989 = vpop.f32.mrb[0].mxu0
    %v990 = vpop.f32.mrb[0].mxu0
    %v991 = vadd.f32 0.0, %v990
    %v992 = vpop.f32.mrb[0].mxu0
    %993 = vdwg.mxu0
    %v994 = vsub.f32 %v902, %v944
    %v995 = vsub.f32 %v905, %v947
    %v996 = vsub.f32 %v988, %v902
    %v997 = vsub.f32 %v991, %v905
    %v998 = vsub.f32 %v996, %v944
    %v999 = vsub.f32 %v997, %v947
    %v1000 = vunpack.c.l.bf16 %v526
    %v1001 = vunpack.c.l.bf16 %v527
    %v1002 = vunpack.c.l.bf16 %v528
    %v1003 = vunpack.c.l.bf16 %v529
    %v1004 = vmul.f32 %v994, %v1000
    %v1005 = vmul.f32 %v995, %v1001
    %v1006 = vadd.f32 %v856, %v1004
    %v1007 = vadd.f32 %v857, %v1005
    %v1008 = vmul.f32 %v998, %v1002
    %v1009 = vmul.f32 %v999, %v1003
    %v1010 = vadd.f32 %v1006, %v1008
    %v1011 = vadd.f32 %v1007, %v1009
    %v1012 = vmul.f32 %v998, %v1000
    %v1013 = vmul.f32 %v999, %v1001
    %v1014 = vadd.f32 %v864, %v1012
    %v1015 = vadd.f32 %v865, %v1013
    %v1016 = vmul.f32 %v994, %v1002
    %v1017 = vmul.f32 %v995, %v1003
    %v1018 = vsub.f32 %v1014, %v1016
    %v1019 = vsub.f32 %v1015, %v1017
    %v1020 = vpack.c.bf16 %v493, %v492
    %1021 = vmatprep.subr.bf16.mxu0 0
    %1022 = vmatpush1.bf16.msra.mxu0 %v1020
    %1023 = vmatprep.subr.bf16.mxu0 0
    %1024 = vmatpush1.bf16.msra.mxu0 0
    %1025 = vmatprep.subr.bf16.mxu0 0
    %1026 = vmatpush1.bf16.msra.mxu0 0
    %1027 = vmatprep.subr.bf16.mxu0 0
    %1028 = vmatpush1.bf16.msra.mxu0 0
    %1029 = vmatprep.subr.bf16.mxu0 0
    %1030 = vmatpush1.bf16.msra.mxu0 0
    %1031 = vmatprep.subr.bf16.mxu0 0
    %1032 = vmatpush1.bf16.msra.mxu0 0
    %1033 = vmatprep.subr.bf16.mxu0 0
    %1034 = vmatpush1.bf16.msra.mxu0 0
    %1035 = vmatprep.subr.bf16.mxu0 0
    %1036 = vmatpush1.bf16.msra.mxu0 0
    %1037 = vmatprep.subr.bf16.mxu0 0
    %1038 = vmatpush1.bf16.msra.mxu0 0
    %1039 = vmatprep.subr.bf16.mxu0 0
    %1040 = vmatpush1.bf16.msra.mxu0 0
    %1041 = vmatprep.subr.bf16.mxu0 0
    %1042 = vmatpush1.bf16.msra.mxu0 0
    %1043 = vmatprep.subr.bf16.mxu0 0
    %1044 = vmatpush1.bf16.msra.mxu0 0
    %1045 = vmatprep.subr.bf16.mxu0 0
    %1046 = vmatpush1.bf16.msra.mxu0 0
    %1047 = vmatprep.subr.bf16.mxu0 0
    %1048 = vmatpush1.bf16.msra.mxu0 0
    %1049 = vmatprep.subr.bf16.mxu0 0
    %1050 = vmatpush1.bf16.msra.mxu0 0
    %1051 = vmatprep.subr.bf16.mxu0 0
    %1052 = vmatpush1.bf16.msra.mxu0 0
    %1053 = vmatprep.mubr.bf16.mxu0 0
    %1054 = vmatmul.mubr.bf16.gmra.mrb[0].mxu0 %v541
    %v1055 = vpop.f32.mrb[0].mxu0
    %v1056 = vadd.f32 0.0, %v1055
    %v1057 = vpop.f32.mrb[0].mxu0
    %v1058 = vpop.f32.mrb[0].mxu0
    %v1059 = vadd.f32 0.0, %v1058
    %v1060 = vpop.f32.mrb[0].mxu0
    %1061 = vdwg.mxu0
    %v1062 = vpack.c.bf16 %v509, %v508
    %1063 = vmatprep.subr.bf16.mxu0 0
    %1064 = vmatpush1.bf16.msra.mxu0 %v1062
    %1065 = vmatprep.subr.bf16.mxu0 0
    %1066 = vmatpush1.bf16.msra.mxu0 0
    %1067 = vmatprep.subr.bf16.mxu0 0
    %1068 = vmatpush1.bf16.msra.mxu0 0
    %1069 = vmatprep.subr.bf16.mxu0 0
    %1070 = vmatpush1.bf16.msra.mxu0 0
    %1071 = vmatprep.subr.bf16.mxu0 0
    %1072 = vmatpush1.bf16.msra.mxu0 0
    %1073 = vmatprep.subr.bf16.mxu0 0
    %1074 = vmatpush1.bf16.msra.mxu0 0
    %1075 = vmatprep.subr.bf16.mxu0 0
    %1076 = vmatpush1.bf16.msra.mxu0 0
    %1077 = vmatprep.subr.bf16.mxu0 0
    %1078 = vmatpush1.bf16.msra.mxu0 0
    %1079 = vmatprep.subr.bf16.mxu0 0
    %1080 = vmatpush1.bf16.msra.mxu0 0
    %1081 = vmatprep.subr.bf16.mxu0 0
    %1082 = vmatpush1.bf16.msra.mxu0 0
    %1083 = vmatprep.subr.bf16.mxu0 0
    %1084 = vmatpush1.bf16.msra.mxu0 0
    %1085 = vmatprep.subr.bf16.mxu0 0
    %1086 = vmatpush1.bf16.msra.mxu0 0
    %1087 = vmatprep.subr.bf16.mxu0 0
    %1088 = vmatpush1.bf16.msra.mxu0 0
    %1089 = vmatprep.subr.bf16.mxu0 0
    %1090 = vmatpush1.bf16.msra.mxu0 0
    %1091 = vmatprep.subr.bf16.mxu0 0
    %1092 = vmatpush1.bf16.msra.mxu0 0
    %1093 = vmatprep.subr.bf16.mxu0 0
    %1094 = vmatpush1.bf16.msra.mxu0 0
    %1095 = vmatprep.mubr.bf16.mxu0 0
    %1096 = vmatmul.mubr.bf16.gmra.mrb[0].mxu0 %v591
    %v1097 = vpop.f32.mrb[0].mxu0
    %v1098 = vadd.f32 0.0, %v1097
    %v1099 = vpop.f32.mrb[0].mxu0
    %v1100 = vpop.f32.mrb[0].mxu0
    %v1101 = vadd.f32 0.0, %v1100
    %v1102 = vpop.f32.mrb[0].mxu0
    %1103 = vdwg.mxu0
    %v1104 = vadd.f32 %v492, %v508
    %v1105 = vadd.f32 %v493, %v509
    %v1106 = vpack.c.bf16 %v1105, %v1104
    %1107 = vmatprep.subr.bf16.mxu0 0
    %1108 = vmatpush1.bf16.msra.mxu0 %v1106
    %1109 = vmatprep.subr.bf16.mxu0 0
    %1110 = vmatpush1.bf16.msra.mxu0 0
    %1111 = vmatprep.subr.bf16.mxu0 0
    %1112 = vmatpush1.bf16.msra.mxu0 0
    %1113 = vmatprep.subr.bf16.mxu0 0
    %1114 = vmatpush1.bf16.msra.mxu0 0
    %1115 = vmatprep.subr.bf16.mxu0 0
    %1116 = vmatpush1.bf16.msra.mxu0 0
    %1117 = vmatprep.subr.bf16.mxu0 0
    %1118 = vmatpush1.bf16.msra.mxu0 0
    %1119 = vmatprep.subr.bf16.mxu0 0
    %1120 = vmatpush1.bf16.msra.mxu0 0
    %1121 = vmatprep.subr.bf16.mxu0 0
    %1122 = vmatpush1.bf16.msra.mxu0 0
    %1123 = vmatprep.subr.bf16.mxu0 0
    %1124 = vmatpush1.bf16.msra.mxu0 0
    %1125 = vmatprep.subr.bf16.mxu0 0
    %1126 = vmatpush1.bf16.msra.mxu0 0
    %1127 = vmatprep.subr.bf16.mxu0 0
    %1128 = vmatpush1.bf16.msra.mxu0 0
    %1129 = vmatprep.subr.bf16.mxu0 0
    %1130 = vmatpush1.bf16.msra.mxu0 0
    %1131 = vmatprep.subr.bf16.mxu0 0
    %1132 = vmatpush1.bf16.msra.mxu0 0
    %1133 = vmatprep.subr.bf16.mxu0 0
    %1134 = vmatpush1.bf16.msra.mxu0 0
    %1135 = vmatprep.subr.bf16.mxu0 0
    %1136 = vmatpush1.bf16.msra.mxu0 0
    %1137 = vmatprep.subr.bf16.mxu0 0
    %1138 = vmatpush1.bf16.msra.mxu0 0
    %1139 = vmatprep.mubr.bf16.mxu0 0
    %1140 = vmatmul.mubr.bf16.gmra.mrb[0].mxu0 %v643
    %v1141 = vpop.f32.mrb[0].mxu0
    %v1142 = vadd.f32 0.0, %v1141
    %v1143 = vpop.f32.mrb[0].mxu0
    %v1144 = vpop.f32.mrb[0].mxu0
    %v1145 = vadd.f32 0.0, %v1144
    %v1146 = vpop.f32.mrb[0].mxu0
    %1147 = vdwg.mxu0
    %v1148 = vsub.f32 %v1056, %v1098
    %v1149 = vsub.f32 %v1059, %v1101
    %v1150 = vsub.f32 %v1142, %v1056
    %v1151 = vsub.f32 %v1145, %v1059
    %v1152 = vsub.f32 %v1150, %v1098
    %v1153 = vsub.f32 %v1151, %v1101
    %v1154 = vunpack.c.l.bf16 %v530
    %v1155 = vunpack.c.l.bf16 %v531
    %v1156 = vunpack.c.l.bf16 %v532
    %v1157 = vunpack.c.l.bf16 %v533
    %v1158 = vmul.f32 %v1148, %v1154
    %v1159 = vmul.f32 %v1149, %v1155
    %v1160 = vadd.f32 %v1010, %v1158
    %v1161 = vadd.f32 %v1011, %v1159
    %v1162 = vmul.f32 %v1152, %v1156
    %v1163 = vmul.f32 %v1153, %v1157
    %v1164 = vadd.f32 %v1160, %v1162
    %v1165 = vadd.f32 %v1161, %v1163
    %v1166 = vmul.f32 %v1152, %v1154
    %v1167 = vmul.f32 %v1153, %v1155
    %v1168 = vadd.f32 %v1018, %v1166
    %v1169 = vadd.f32 %v1019, %v1167
    %v1170 = vmul.f32 %v1148, %v1156
    %v1171 = vmul.f32 %v1149, %v1157
    %v1172 = vsub.f32 %v1168, %v1170
    %v1173 = vsub.f32 %v1169, %v1171
    %p1174 = scmp.eq.s32.totalorder 0, 0
    // Predicated region
    $region50: #{tpu_custom_call.1} parent=1 // pred_check
      %p1175 = pneg %p1174
    $region51: #{tpu_custom_call.1} parent=1 // pred_check_branch
      %1177 = sbr.rel (%p1175) target = $region53
    $region52: #{tpu_custom_call.1} parent=1 // pred_region
      %1178 = vst.msk [vmem:[#allocation13] sm:$0xff] %vm194, %v1164
      %1179 = vst.msk [vmem:[#allocation13 + $0x8] sm:$0xff] %vm194, %v1165
      %s1180 = scalar_lea.vmem [#allocation13], 16
      %1181 = vst.msk [vmem:[%s1180] sm:$0xff] %vm194, %v1172
      %1182 = vst.msk [vmem:[%s1180 + $0x8] sm:$0xff] %vm194, %v1173
    $region53: #{tpu_custom_call.1} parent=1 // pred_fallthru
      _
    %p1183 = scmp.ne.s32.totalorder 0, 0
    // Predicated region
    $region54: #{tpu_custom_call.1} parent=1 // pred_check
      %p1184 = pneg %p1183
    $region55: #{tpu_custom_call.1} parent=1 // pred_check_branch
      %1186 = sbr.rel (%p1184) target = $region57
    $region56: #{tpu_custom_call.1} parent=1 // pred_region
      %v1187 = vld [vmem:[#allocation13] sm:$0xff]
      %v1188 = vld [vmem:[#allocation13 + $0x8] sm:$0xff]
      %v1189 = vadd.f32 %v1187, %v1164
      %v1190 = vadd.f32 %v1188, %v1165
      %1191 = vst.msk [vmem:[#allocation13] sm:$0xff] %vm194, %v1189
      %1192 = vst.msk [vmem:[#allocation13 + $0x8] sm:$0xff] %vm194, %v1190
      %s1193 = scalar_lea.vmem [#allocation13], 16
      %v1194 = vld [vmem:[%s1193] sm:$0xff]
      %v1195 = vld [vmem:[%s1193 + $0x8] sm:$0xff]
      %v1196 = vadd.f32 %v1194, %v1172
      %v1197 = vadd.f32 %v1195, %v1173
      %1198 = vst.msk [vmem:[%s1193] sm:$0xff] %vm194, %v1196
      %1199 = vst.msk [vmem:[%s1193 + $0x8] sm:$0xff] %vm194, %v1197
    $region57: #{tpu_custom_call.1} parent=1 // pred_fallthru
      _
    // Predicated region
    $region58: #{tpu_custom_call.1} parent=1 // pred_check
      _
    $region59: #{tpu_custom_call.1} parent=1 // pred_check_branch
      %1201 = sbr.rel (0) target = $region61
    $region60: #{tpu_custom_call.1} parent=1 // pred_region
      %s1203 = ssub.s32 512, 512
      %1204 = vsyncadd [#allocation4], %s1203
      %s1205 = sshll.u32 [#allocation13], 4
      %s1206 = int_to_ptr.vmem [resolvable:$true] %s1205
      %1211 = dma.vmem_to_hbm [thread:$0]  %s1206, 512, %s6, [#allocation4], 128, 128, 8
    $region61: #{tpu_custom_call.1} parent=1 // pred_fallthru
      _
    // Predicated region
    $region62: #{tpu_custom_call.1} parent=1 // pred_check
      _
    $region63: #{tpu_custom_call.1} parent=1 // pred_check_branch
      %1213 = sbr.rel (0) target = $region65
    $region64: #{tpu_custom_call.1} parent=1 // pred_region
      %1214 = dma.done [#allocation4], 512
    $region65: #{tpu_custom_call.1} parent=1 // pred_fallthru
      _
    %1215 = vsyncpa [#allocation3], 1
    %1216 = vsyncpa [#allocation6], 1
    %1217 = vsyncpa [#allocation9], 1
    %1218 = vsyncpa [#allocation12], 1
    %1219 = vsyncpa [#allocation4], 1

</llo_original>
